<compile_context>
chip_gen: v7x
topology: tpu7x:2x2x1
jax: 0.10.0
libtpu: 0.0.40
codegen_flags: <defaults>
</compile_context>

<pallas_src>
import functools

import jax
import jax.numpy as jnp
from jax import lax
from jax.experimental import pallas as pl
from jax.experimental.pallas import tpu as pltpu


def mil_kernel(rgb_ref, flow_ref, wr_ref, br_ref, wf_ref, bf_ref,
               wtr_ref, wtf_ref, bt_ref, wm_ref, bm_ref, out_ref,
               *, t_real, precision, compute_dtype):
    tb, t, dr = rgb_ref.shape            # TB bags, T_pad segments, D_rgb
    df = flow_ref.shape[2]
    h_dim = wr_ref.shape[1]              # H
    dt = wtr_ref.shape[1]                # Dt
    n = tb * t

    # ---- Layer 1: two independent MXU matmuls (f32 accumulation) + ReLU. ---
    rgb = rgb_ref[...].reshape(n, dr)
    flow = flow_ref[...].reshape(n, df)
    h_rgb = jnp.dot(rgb, wr_ref[...], preferred_element_type=jnp.float32,
                    precision=precision)
    h_rgb = jnp.maximum(h_rgb + br_ref[...], 0.0)                  # (n, H) f32
    h_flow = jnp.dot(flow, wf_ref[...], preferred_element_type=jnp.float32,
                     precision=precision)
    h_flow = jnp.maximum(h_flow + bf_ref[...], 0.0)                # (n, H) f32

    hr3 = h_rgb.reshape(tb, t, h_dim)
    hf3 = h_flow.reshape(tb, t, h_dim)

    # Zero padded temporal rows so they don't pollute the per-bag L2 norm
    # (padded input rows would otherwise contribute relu(bias)).
    if t_real != t:
        valid = lax.broadcasted_iota(jnp.int32, (1, t, 1), 1) < t_real
        hr3 = jnp.where(valid, hr3, 0.0)
        hf3 = jnp.where(valid, hf3, 0.0)

    # ---- F.normalize(p=2, dim=1): per-bag L2 norm over the TEMPORAL axis.
    # PyTorch eps semantics: x / max(||x||, 1e-12) == x * rsqrt(max(ssq, 1e-24)).
    inv_r = lax.rsqrt(jnp.maximum(jnp.sum(hr3 * hr3, axis=1, keepdims=True), 1e-24))
    inv_f = lax.rsqrt(jnp.maximum(jnp.sum(hf3 * hf3, axis=1, keepdims=True), 1e-24))
    hr = (hr3 * inv_r).reshape(n, h_dim)
    hf = (hf3 * inv_f).reshape(n, h_dim)

    # ---- t_model: Linear(2H -> Dt) + ReLU.  The feature-axis concat is
    # folded into two matmuls against the two halves of W_t (no in-kernel
    # concatenation / relayout).
    tfeat = (jnp.dot(hr.astype(compute_dtype), wtr_ref[...],
                     preferred_element_type=jnp.float32, precision=precision)
             + jnp.dot(hf.astype(compute_dtype), wtf_ref[...],
                       preferred_element_type=jnp.float32, precision=precision)
             + bt_ref[...])
    tfeat = jnp.maximum(tfeat, 0.0)                                # (n, Dt) f32

    # ---- mil_model: Linear(Dt -> 1) + sigmoid as VPU multiply + lane reduce,
    # producing a lane-dense (tb, t) score tile (no (n,1) masked stores).
    t3 = tfeat.reshape(tb, t, dt)
    s = jnp.sum(t3 * wm_ref[...].reshape(1, 1, dt), axis=-1)       # (tb, t)
    s = s + bm_ref[...]                                            # (1,1) bcast
    out_ref[...] = jax.nn.sigmoid(s).reshape(1, tb, t)


def _vmem_capacity_bytes():
    try:
        info = pltpu.get_tpu_info()
        cap = getattr(info, "vmem_capacity_bytes", None)
        if cap:
            return int(cap)
    except Exception:
        pass
    return 64 * 2**20      # conservative fallback: v7x per-TensorCore VMEM


def _largest_divisor_leq(b, cap):
    cap = max(1, cap)
    best = 1
    for d in range(1, b + 1):
        if b % d == 0 and d <= cap:
            best = d
    return best


def _derive_tiling(B, T_pad, Dr, Df, H, Dt, in_itemsize, max_rows_per_step):
    """Pick TB (bags per grid step) from the VMEM budget; return (TB, vmem_limit)."""
    cap = _vmem_capacity_bytes()
    vmem_limit = min(cap * 3 // 4, 100 * 2**20)
    # Constant VMEM: weights/biases (double-buffered by the pipeline).
    weight_bytes = 2 * ((Dr * H + Df * H + 2 * H * Dt) * in_itemsize
                        + (2 * H + 2 * Dt + 1) * 4)
    # Per-row VMEM: double-buffered input rows + live f32 intermediates.
    per_row = (2 * (Dr + Df) * in_itemsize     # rgb/flow double buffers
               + 6 * H * 4                     # h_rgb/h_flow (+ normalized)
               + 2 * Dt * 4                    # t_model activations (+ slack)
               + 8)
    budget = max(vmem_limit - weight_bytes - (2 << 20), per_row * T_pad)
    rows = min(budget // per_row, 2048)        # diminishing returns past ~2K rows
    if max_rows_per_step is not None:
        rows = min(rows, max_rows_per_step)
    rows = max(rows, T_pad)                    # must hold at least one bag
    bag_cap = max(1, rows // T_pad)
    if B >= 2:
        bag_cap = min(bag_cap, B // 2)         # >=2 grid steps for v7x's 2 TCs
    return _largest_divisor_leq(B, bag_cap), int(vmem_limit)


def mil_forward(rgb, flow, params, *, compute_dtype=jnp.float32,
                max_rows_per_step=None):
    """rgb: (B, T, D_rgb), flow: (B, T, D_flow)  ->  sigmoid MIL scores (B*T, 1)."""
    B, T, Dr = rgb.shape
    _, _, Df = flow.shape
    H = params["w_rgb"].shape[1]
    Dt = params["w_t"].shape[1]

    # Pad T to a multiple of 8 (layout no-op reshapes, (8,128)-friendly blocks).
    T_pad = -(-T // 8) * 8
    if T_pad != T:
        pad = ((0, 0), (0, T_pad - T), (0, 0))
        rgb = jnp.pad(rgb, pad)
        flow = jnp.pad(flow, pad)

    compute_dtype = jnp.dtype(compute_dtype)
    in_itemsize = compute_dtype.itemsize
    # f32 path uses exact-f32 MXU passes so it matches the f32 reference to
    # ~1e-6; bf16 path uses the native single-pass bf16 MXU rate.
    precision = lax.Precision.HIGHEST if compute_dtype == jnp.float32 else None

    # Matmul operands in compute_dtype; biases / epilogue constants stay f32.
    rgb_c = rgb.astype(compute_dtype)
    flow_c = flow.astype(compute_dtype)
    wr = params["w_rgb"].astype(compute_dtype)
    wf = params["w_flow"].astype(compute_dtype)
    wt_r = params["w_t"][:H, :].astype(compute_dtype)
    wt_f = params["w_t"][H:, :].astype(compute_dtype)
    br = params["b_rgb"].astype(jnp.float32).reshape(1, H)
    bf = params["b_flow"].astype(jnp.float32).reshape(1, H)
    bt = params["b_t"].astype(jnp.float32).reshape(1, Dt)
    wm = params["w_mil"].astype(jnp.float32).reshape(1, Dt)
    bm = params["b_mil"].astype(jnp.float32).reshape(1, 1)

    TB, vmem_limit = _derive_tiling(B, T_pad, Dr, Df, H, Dt, in_itemsize,
                                    max_rows_per_step)
    G = B // TB

    kernel = functools.partial(mil_kernel, t_real=T, precision=precision,
                               compute_dtype=compute_dtype)
    const2d = lambda i: (0, 0)

    grid_spec = pltpu.PrefetchScalarGridSpec(
        num_scalar_prefetch=0,
        grid=(G,),
        in_specs=[
            pl.BlockSpec((TB, T_pad, Dr), lambda i: (i, 0, 0)),   # rgb
            pl.BlockSpec((TB, T_pad, Df), lambda i: (i, 0, 0)),   # flow
            pl.BlockSpec((Dr, H), const2d),                       # W_rgb
            pl.BlockSpec((1, H), const2d),                        # b_rgb
            pl.BlockSpec((Df, H), const2d),                       # W_flow
            pl.BlockSpec((1, H), const2d),                        # b_flow
            pl.BlockSpec((H, Dt), const2d),                       # W_t (rgb half)
            pl.BlockSpec((H, Dt), const2d),                       # W_t (flow half)
            pl.BlockSpec((1, Dt), const2d),                       # b_t
            pl.BlockSpec((1, Dt), const2d),                       # w_mil row
            pl.BlockSpec((1, 1), const2d),                        # b_mil
        ],
        out_specs=pl.BlockSpec((1, TB, T_pad), lambda i: (i, 0, 0)),
    )

    scores = pl.pallas_call(
        kernel,
        out_shape=jax.ShapeDtypeStruct((G, TB, T_pad), jnp.float32),
        grid_spec=grid_spec,
        compiler_params=pltpu.CompilerParams(
            dimension_semantics=("parallel",),
            vmem_limit_bytes=vmem_limit),
    )(rgb_c, flow_c, wr, br, wf, bf, wt_r, wt_f, bt, wm, bm)

    # (G, TB, T_pad) -> (B, T_pad) -> drop padded rows -> (B*T, 1),
    # matching PyTorch's `inputs.view(-1, inputs.size(-1))` row order.
    return scores.reshape(B, T_pad)[:, :T].reshape(B * T, 1)


def mil_forward_ref(rgb, flow, params):
    """Pure-JAX reference mirroring the PyTorch forward (inference path)."""
    p = lax.Precision.HIGHEST
    h_rgb = jnp.maximum(
        jnp.einsum("btd,dh->bth", rgb, params["w_rgb"], precision=p)
        + params["b_rgb"], 0.0)
    h_flow = jnp.maximum(
        jnp.einsum("btd,dh->bth", flow, params["w_flow"], precision=p)
        + params["b_flow"], 0.0)
    h_rgb = h_rgb / jnp.maximum(
        jnp.sqrt(jnp.sum(h_rgb ** 2, axis=1, keepdims=True)), 1e-12)
    h_flow = h_flow / jnp.maximum(
        jnp.sqrt(jnp.sum(h_flow ** 2, axis=1, keepdims=True)), 1e-12)
    xcat = jnp.concatenate([h_rgb, h_flow], axis=2)
    t = jnp.maximum(
        jnp.einsum("btd,de->bte", xcat, params["w_t"], precision=p)
        + params["b_t"], 0.0)
    t = t.reshape(-1, t.shape[-1])
    s = jnp.dot(t, params["w_mil"], precision=p) + params["b_mil"]
    return jax.nn.sigmoid(s)


def make_params(key, d_rgb, d_flow, h, d_t):
    ks = jax.random.split(key, 8)
    scale = 0.1
    return {
        "w_rgb": scale * jax.random.normal(ks[0], (d_rgb, h), jnp.float32),
        "b_rgb": scale * jax.random.normal(ks[1], (1, h), jnp.float32),
        "w_flow": scale * jax.random.normal(ks[2], (d_flow, h), jnp.float32),
        "b_flow": scale * jax.random.normal(ks[3], (1, h), jnp.float32),
        "w_t": scale * jax.random.normal(ks[4], (2 * h, d_t), jnp.float32),
        "b_t": scale * jax.random.normal(ks[5], (1, d_t), jnp.float32),
        "w_mil": scale * jax.random.normal(ks[6], (d_t, 1), jnp.float32),
        "b_mil": scale * jax.random.normal(ks[7], (1, 1), jnp.float32),
    }


if __name__ == "__main__":
    key = jax.random.PRNGKey(0)

    # --- Test 1: small shapes, f32; TB<=B//2 forces a 2-step grid. ----------
    B, T = 2, 8             # bags, segments per bag
    D_RGB, D_FLOW = 32, 32  # per-segment feature dims
    H, D_T = 32, 64         # mlp hidden, t_model output dim
    k_rgb, k_flow, k_params, k2 = jax.random.split(key, 4)
    rgb = jax.random.normal(k_rgb, (B, T, D_RGB), jnp.float32)
    flow = jax.random.normal(k_flow, (B, T, D_FLOW), jnp.float32)
    params = make_params(k_params, D_RGB, D_FLOW, H, D_T)

    out = jax.block_until_ready(mil_forward(rgb, flow, params))
    ref = jax.block_until_ready(mil_forward_ref(rgb, flow, params))
    assert out.shape == (B * T, 1)
    assert jnp.max(jnp.abs(out - ref)) < 5e-5

    # --- Test 2: more bags, forced multi-step bag blocking (TB=2, G=4). -----
    B2 = 8
    k_rgb2, k_flow2, k_params2 = jax.random.split(k2, 3)
    rgb2 = jax.random.normal(k_rgb2, (B2, T, D_RGB), jnp.float32)
    flow2 = jax.random.normal(k_flow2, (B2, T, D_FLOW), jnp.float32)
    params2 = make_params(k_params2, D_RGB, D_FLOW, H, D_T)
    out2 = jax.block_until_ready(
        mil_forward(rgb2, flow2, params2, max_rows_per_step=16))
    ref2 = jax.block_until_ready(mil_forward_ref(rgb2, flow2, params2))
    assert out2.shape == (B2 * T, 1)
    assert jnp.max(jnp.abs(out2 - ref2)) < 5e-5

    # --- Test 3: bf16 matmul path (f32 accumulation + f32 epilogue). --------
    out3 = jax.block_until_ready(
        mil_forward(rgb2, flow2, params2, compute_dtype=jnp.bfloat16))
    assert out3.shape == (B2 * T, 1)
    assert jnp.max(jnp.abs(out3 - ref2)) < 2e-2

    # --- Test 4: T not a multiple of 8 exercises the pad + norm-mask path. --
    T3 = 6
    rgb3 = jax.random.normal(k_rgb2, (B, T3, D_RGB), jnp.float32)
    flow3 = jax.random.normal(k_flow2, (B, T3, D_FLOW), jnp.float32)
    out4 = jax.block_until_ready(mil_forward(rgb3, flow3, params))
    ref4 = jax.block_until_ready(mil_forward_ref(rgb3, flow3, params))
    assert out4.shape == (B * T3, 1)
    assert jnp.max(jnp.abs(out4 - ref4)) < 5e-5

    print("KERNEL_OK")
</pallas_src>

<mosaic_0001>
module attributes {stable_mosaic.version = 11 : i64} {
  func.func @mil_kernel(%arg0: i32, %arg1: memref<1x8x32xf32, #tpu.memory_space<vmem>>, %arg2: memref<1x8x32xf32, #tpu.memory_space<vmem>>, %arg3: memref<32x32xf32, #tpu.memory_space<vmem>>, %arg4: memref<1x32xf32, #tpu.memory_space<vmem>>, %arg5: memref<32x32xf32, #tpu.memory_space<vmem>>, %arg6: memref<1x32xf32, #tpu.memory_space<vmem>>, %arg7: memref<32x64xf32, #tpu.memory_space<vmem>>, %arg8: memref<32x64xf32, #tpu.memory_space<vmem>>, %arg9: memref<1x64xf32, #tpu.memory_space<vmem>>, %arg10: memref<1x64xf32, #tpu.memory_space<vmem>>, %arg11: memref<1x1xf32, #tpu.memory_space<vmem>>, %arg12: memref<1x1x8xf32, #tpu.memory_space<vmem>>) attributes {dimension_semantics = [#tpu.dimension_semantics<parallel>], iteration_bounds = array<i64: 2>, scalar_prefetch = 0 : i64, scratch_operands = 0 : i64, tpu.core_type = #tpu.core_type<tc>, window_params = [{transform_indices = @transform_0, window_bounds = array<i64: 1, 8, 32>}, {transform_indices = @transform_1, window_bounds = array<i64: 1, 8, 32>}, {pipeline_mode = #tpu.pipeline_mode<synchronous>, transform_indices = @transform_2, window_bounds = array<i64: 32, 32>}, {pipeline_mode = #tpu.pipeline_mode<synchronous>, transform_indices = @transform_3, window_bounds = array<i64: 1, 32>}, {pipeline_mode = #tpu.pipeline_mode<synchronous>, transform_indices = @transform_4, window_bounds = array<i64: 32, 32>}, {pipeline_mode = #tpu.pipeline_mode<synchronous>, transform_indices = @transform_5, window_bounds = array<i64: 1, 32>}, {pipeline_mode = #tpu.pipeline_mode<synchronous>, transform_indices = @transform_6, window_bounds = array<i64: 32, 64>}, {pipeline_mode = #tpu.pipeline_mode<synchronous>, transform_indices = @transform_7, window_bounds = array<i64: 32, 64>}, {pipeline_mode = #tpu.pipeline_mode<synchronous>, transform_indices = @transform_8, window_bounds = array<i64: 1, 64>}, {pipeline_mode = #tpu.pipeline_mode<synchronous>, transform_indices = @transform_9, window_bounds = array<i64: 1, 64>}, {pipeline_mode = #tpu.pipeline_mode<synchronous>, transform_indices = @transform_10, window_bounds = array<i64: 1, 1>}, {transform_indices = @transform_11, window_bounds = array<i64: 1, 1, 8>}]} {
    %c0 = arith.constant 0 : index
    %c0_0 = arith.constant 0 : index
    %c0_1 = arith.constant 0 : index
    %0 = vector.load %arg1[%c0, %c0_0, %c0_1] : memref<1x8x32xf32, #tpu.memory_space<vmem>>, vector<1x8x32xf32>
    %1 = vector.shape_cast %0 : vector<1x8x32xf32> to vector<8x32xf32>
    %c0_2 = arith.constant 0 : index
    %c0_3 = arith.constant 0 : index
    %c0_4 = arith.constant 0 : index
    %2 = vector.load %arg2[%c0_2, %c0_3, %c0_4] : memref<1x8x32xf32, #tpu.memory_space<vmem>>, vector<1x8x32xf32>
    %3 = vector.shape_cast %2 : vector<1x8x32xf32> to vector<8x32xf32>
    %c0_5 = arith.constant 0 : index
    %c0_6 = arith.constant 0 : index
    %4 = vector.load %arg3[%c0_5, %c0_6] : memref<32x32xf32, #tpu.memory_space<vmem>>, vector<32x32xf32>
    %cst = arith.constant dense<0.000000e+00> : vector<8x32xf32>
    %5 = tpu.matmul %1, %4, %cst {dimension_numbers = #tpu.dot_dimension_numbers<[1], [0], [0], [1], [0, 0, 1, 1], [], []>, precision = #tpu.contract_precision<fp32>} : vector<8x32xf32>, vector<32x32xf32>, vector<8x32xf32> -> vector<8x32xf32>
    %c0_7 = arith.constant 0 : index
    %c0_8 = arith.constant 0 : index
    %6 = vector.load %arg4[%c0_7, %c0_8] : memref<1x32xf32, #tpu.memory_space<vmem>>, vector<1x32xf32>
    %7 = vector.broadcast %6 : vector<1x32xf32> to vector<8x32xf32>
    %8 = arith.addf %5, %7 : vector<8x32xf32>
    %cst_9 = arith.constant 0.000000e+00 : f32
    %9 = vector.broadcast %cst_9 : f32 to vector<8x32xf32>
    %10 = arith.maximumf %8, %9 : vector<8x32xf32>
    %c0_10 = arith.constant 0 : index
    %c0_11 = arith.constant 0 : index
    %11 = vector.load %arg5[%c0_10, %c0_11] : memref<32x32xf32, #tpu.memory_space<vmem>>, vector<32x32xf32>
    %cst_12 = arith.constant dense<0.000000e+00> : vector<8x32xf32>
    %12 = tpu.matmul %3, %11, %cst_12 {dimension_numbers = #tpu.dot_dimension_numbers<[1], [0], [0], [1], [0, 0, 1, 1], [], []>, precision = #tpu.contract_precision<fp32>} : vector<8x32xf32>, vector<32x32xf32>, vector<8x32xf32> -> vector<8x32xf32>
    %c0_13 = arith.constant 0 : index
    %c0_14 = arith.constant 0 : index
    %13 = vector.load %arg6[%c0_13, %c0_14] : memref<1x32xf32, #tpu.memory_space<vmem>>, vector<1x32xf32>
    %14 = vector.broadcast %13 : vector<1x32xf32> to vector<8x32xf32>
    %15 = arith.addf %12, %14 : vector<8x32xf32>
    %cst_15 = arith.constant 0.000000e+00 : f32
    %16 = vector.broadcast %cst_15 : f32 to vector<8x32xf32>
    %17 = arith.maximumf %15, %16 : vector<8x32xf32>
    %18 = vector.shape_cast %10 : vector<8x32xf32> to vector<1x8x32xf32>
    %19 = vector.shape_cast %17 : vector<8x32xf32> to vector<1x8x32xf32>
    %20 = arith.mulf %18, %18 : vector<1x8x32xf32>
    %cst_16 = arith.constant dense<0.000000e+00> : vector<1x32xf32>
    %21 = vector.multi_reduction <add>, %20, %cst_16 [1] : vector<1x8x32xf32> to vector<1x32xf32>
    %22 = vector.shape_cast %21 : vector<1x32xf32> to vector<1x1x32xf32>
    %cst_17 = arith.constant 1.000000e-24 : f32
    %23 = vector.broadcast %cst_17 : f32 to vector<1x1x32xf32>
    %24 = arith.maximumf %22, %23 : vector<1x1x32xf32>
    %25 = math.rsqrt %24 : vector<1x1x32xf32>
    %26 = arith.mulf %19, %19 : vector<1x8x32xf32>
    %cst_18 = arith.constant dense<0.000000e+00> : vector<1x32xf32>
    %27 = vector.multi_reduction <add>, %26, %cst_18 [1] : vector<1x8x32xf32> to vector<1x32xf32>
    %28 = vector.shape_cast %27 : vector<1x32xf32> to vector<1x1x32xf32>
    %cst_19 = arith.constant 1.000000e-24 : f32
    %29 = vector.broadcast %cst_19 : f32 to vector<1x1x32xf32>
    %30 = arith.maximumf %28, %29 : vector<1x1x32xf32>
    %31 = math.rsqrt %30 : vector<1x1x32xf32>
    %32 = vector.broadcast %25 : vector<1x1x32xf32> to vector<1x8x32xf32>
    %33 = arith.mulf %18, %32 : vector<1x8x32xf32>
    %34 = vector.shape_cast %33 : vector<1x8x32xf32> to vector<8x32xf32>
    %35 = vector.broadcast %31 : vector<1x1x32xf32> to vector<1x8x32xf32>
    %36 = arith.mulf %19, %35 : vector<1x8x32xf32>
    %37 = vector.shape_cast %36 : vector<1x8x32xf32> to vector<8x32xf32>
    %c0_20 = arith.constant 0 : index
    %c0_21 = arith.constant 0 : index
    %38 = vector.load %arg7[%c0_20, %c0_21] : memref<32x64xf32, #tpu.memory_space<vmem>>, vector<32x64xf32>
    %cst_22 = arith.constant dense<0.000000e+00> : vector<8x64xf32>
    %39 = tpu.matmul %34, %38, %cst_22 {dimension_numbers = #tpu.dot_dimension_numbers<[1], [0], [0], [1], [0, 0, 1, 1], [], []>, precision = #tpu.contract_precision<fp32>} : vector<8x32xf32>, vector<32x64xf32>, vector<8x64xf32> -> vector<8x64xf32>
    %c0_23 = arith.constant 0 : index
    %c0_24 = arith.constant 0 : index
    %40 = vector.load %arg8[%c0_23, %c0_24] : memref<32x64xf32, #tpu.memory_space<vmem>>, vector<32x64xf32>
    %cst_25 = arith.constant dense<0.000000e+00> : vector<8x64xf32>
    %41 = tpu.matmul %37, %40, %cst_25 {dimension_numbers = #tpu.dot_dimension_numbers<[1], [0], [0], [1], [0, 0, 1, 1], [], []>, precision = #tpu.contract_precision<fp32>} : vector<8x32xf32>, vector<32x64xf32>, vector<8x64xf32> -> vector<8x64xf32>
    %42 = arith.addf %39, %41 : vector<8x64xf32>
    %c0_26 = arith.constant 0 : index
    %c0_27 = arith.constant 0 : index
    %43 = vector.load %arg9[%c0_26, %c0_27] : memref<1x64xf32, #tpu.memory_space<vmem>>, vector<1x64xf32>
    %44 = vector.broadcast %43 : vector<1x64xf32> to vector<8x64xf32>
    %45 = arith.addf %42, %44 : vector<8x64xf32>
    %cst_28 = arith.constant 0.000000e+00 : f32
    %46 = vector.broadcast %cst_28 : f32 to vector<8x64xf32>
    %47 = arith.maximumf %45, %46 : vector<8x64xf32>
    %48 = vector.shape_cast %47 : vector<8x64xf32> to vector<1x8x64xf32>
    %c0_29 = arith.constant 0 : index
    %c0_30 = arith.constant 0 : index
    %49 = vector.load %arg10[%c0_29, %c0_30] : memref<1x64xf32, #tpu.memory_space<vmem>>, vector<1x64xf32>
    %50 = vector.shape_cast %49 : vector<1x64xf32> to vector<1x1x64xf32>
    %51 = vector.broadcast %50 : vector<1x1x64xf32> to vector<1x8x64xf32>
    %52 = arith.mulf %48, %51 : vector<1x8x64xf32>
    %cst_31 = arith.constant dense<0.000000e+00> : vector<1x8xf32>
    %53 = vector.multi_reduction <add>, %52, %cst_31 [2] : vector<1x8x64xf32> to vector<1x8xf32>
    %c0_32 = arith.constant 0 : index
    %c0_33 = arith.constant 0 : index
    %54 = vector.load %arg11[%c0_32, %c0_33] : memref<1x1xf32, #tpu.memory_space<vmem>>, vector<1x1xf32>
    %55 = vector.broadcast %54 : vector<1x1xf32> to vector<1x8xf32>
    %56 = arith.addf %53, %55 : vector<1x8xf32>
    %57 = arith.negf %56 : vector<1x8xf32>
    %58 = math.exp %57 : vector<1x8xf32>
    %cst_34 = arith.constant 1.000000e+00 : f32
    %59 = vector.broadcast %cst_34 : f32 to vector<1x8xf32>
    %60 = arith.addf %59, %58 : vector<1x8xf32>
    %61 = arith.divf %59, %60 : vector<1x8xf32>
    %62 = vector.shape_cast %61 : vector<1x8xf32> to vector<1x1x8xf32>
    %c0_35 = arith.constant 0 : index
    %c0_36 = arith.constant 0 : index
    %c0_37 = arith.constant 0 : index
    %63 = vector.load %arg12[%c0_35, %c0_36, %c0_37] : memref<1x1x8xf32, #tpu.memory_space<vmem>>, vector<1x1x8xf32>
    tpu.vector_store %arg12[%c0_35, %c0_36, %c0_37], %62 {strides = array<i32>} : memref<1x1x8xf32, #tpu.memory_space<vmem>>, vector<1x1x8xf32>,
    return
  }
  func.func @transform_0(%arg0: i32) -> (i32, i32, i32) {
    %c0_i32 = arith.constant 0 : i32
    %c0_i32_0 = arith.constant 0 : i32
    %c0_i32_1 = arith.constant 0 : i32
    return %arg0, %c0_i32, %c0_i32_0 : i32, i32, i32
  }
  func.func @transform_1(%arg0: i32) -> (i32, i32, i32) {
    %c0_i32 = arith.constant 0 : i32
    %c0_i32_0 = arith.constant 0 : i32
    %c0_i32_1 = arith.constant 0 : i32
    return %arg0, %c0_i32, %c0_i32_0 : i32, i32, i32
  }
  func.func @transform_2(%arg0: i32) -> (i32, i32) {
    %c0_i32 = arith.constant 0 : i32
    %c0_i32_0 = arith.constant 0 : i32
    %c0_i32_1 = arith.constant 0 : i32
    return %c0_i32, %c0_i32_0 : i32, i32
  }
  func.func @transform_3(%arg0: i32) -> (i32, i32) {
    %c0_i32 = arith.constant 0 : i32
    %c0_i32_0 = arith.constant 0 : i32
    %c0_i32_1 = arith.constant 0 : i32
    return %c0_i32, %c0_i32_0 : i32, i32
  }
  func.func @transform_4(%arg0: i32) -> (i32, i32) {
    %c0_i32 = arith.constant 0 : i32
    %c0_i32_0 = arith.constant 0 : i32
    %c0_i32_1 = arith.constant 0 : i32
    return %c0_i32, %c0_i32_0 : i32, i32
  }
  func.func @transform_5(%arg0: i32) -> (i32, i32) {
    %c0_i32 = arith.constant 0 : i32
    %c0_i32_0 = arith.constant 0 : i32
    %c0_i32_1 = arith.constant 0 : i32
    return %c0_i32, %c0_i32_0 : i32, i32
  }
  func.func @transform_6(%arg0: i32) -> (i32, i32) {
    %c0_i32 = arith.constant 0 : i32
    %c0_i32_0 = arith.constant 0 : i32
    %c0_i32_1 = arith.constant 0 : i32
    return %c0_i32, %c0_i32_0 : i32, i32
  }
  func.func @transform_7(%arg0: i32) -> (i32, i32) {
    %c0_i32 = arith.constant 0 : i32
    %c0_i32_0 = arith.constant 0 : i32
    %c0_i32_1 = arith.constant 0 : i32
    return %c0_i32, %c0_i32_0 : i32, i32
  }
  func.func @transform_8(%arg0: i32) -> (i32, i32) {
    %c0_i32 = arith.constant 0 : i32
    %c0_i32_0 = arith.constant 0 : i32
    %c0_i32_1 = arith.constant 0 : i32
    return %c0_i32, %c0_i32_0 : i32, i32
  }
  func.func @transform_9(%arg0: i32) -> (i32, i32) {
    %c0_i32 = arith.constant 0 : i32
    %c0_i32_0 = arith.constant 0 : i32
    %c0_i32_1 = arith.constant 0 : i32
    return %c0_i32, %c0_i32_0 : i32, i32
  }
  func.func @transform_10(%arg0: i32) -> (i32, i32) {
    %c0_i32 = arith.constant 0 : i32
    %c0_i32_0 = arith.constant 0 : i32
    %c0_i32_1 = arith.constant 0 : i32
    return %c0_i32, %c0_i32_0 : i32, i32
  }
  func.func @transform_11(%arg0: i32) -> (i32, i32, i32) {
    %c0_i32 = arith.constant 0 : i32
    %c0_i32_0 = arith.constant 0 : i32
    %c0_i32_1 = arith.constant 0 : i32
    return %arg0, %c0_i32, %c0_i32_0 : i32, i32, i32
  }
}

</mosaic_0001>

<llo_original>
// kernel: tpu_custom_call.1
$region0: #{tpu_custom_call.1}
  #allocation0 [shape = 'u32[]', space=smem, size = 0x4, offset = 0x4, fixed_abs, tag = 'smem constant byte address 0x4 - core index']
  #allocation1 [shape = 'u32[144,128]{1,0:T(1,128)}', space=vmem, size = 0x12000, scoped, tag = 'internal scratch']
  #allocation2 [shape = 'f32[1,1]{1,0:T(1,128)S(1)}', space=vmem, size = 0x200, scoped, tag = 'scoped memory for tpu_custom_call.1']
  %s0 = inlined_call_operand.hbm [shape: f32[2,8,32], index: 0, kind: input, shape index: {}]
  %s1 = inlined_call_operand.hbm [shape: f32[2,8,32], index: 1, kind: input, shape index: {}]
  %s2 = inlined_call_operand.hbm [shape: f32[32,32], index: 2, kind: input, shape index: {}]
  %s3 = inlined_call_operand.vmem [shape: f32[1,32], index: 3, kind: input, shape index: {}]
  %s4 = inlined_call_operand.hbm [shape: f32[32,32], index: 4, kind: input, shape index: {}]
  %s5 = inlined_call_operand.vmem [shape: f32[1,32], index: 5, kind: input, shape index: {}]
  %s6 = inlined_call_operand.hbm [shape: f32[32,64], index: 6, kind: input, shape index: {}]
  %s7 = inlined_call_operand.hbm [shape: f32[32,64], index: 7, kind: input, shape index: {}]
  %s8 = inlined_call_operand.vmem [shape: f32[1,64], index: 8, kind: input, shape index: {}]
  %s9 = inlined_call_operand.vmem [shape: f32[1,64], index: 9, kind: input, shape index: {}]
  %s10 = inlined_call_operand.<no memory space> [shape: f32[1,1], index: 10, kind: input, shape index: {}]
  %s11 = inlined_call_operand.hbm [shape: f32[2,1,8], index: 11, kind: output, shape index: {}]
  %s12 = sld [smem:[#allocation0]]
  $region101: #{tpu_custom_call.1} parent=0
    _
  %s14 = ssub.s32 1, %s12
  %s15 = scalar_select 0, %s14, %s12
  %v16 = vstv %s10
  %17 = vst [vmem:[#allocation2] sm:$0x1] %v16
  $region1: #{tpu_custom_call.1} parent=0
    #allocation3 [shape = 'u8[8192]{0}', space=vmem, size = 0x2000, scoped, tag = 'input window, operand 0']
    #allocation4 [shape = 's32[2]{0}', space=sflag, size = 0x8, scoped, tag = 'scoped memory for tpu_custom_call.1']
    #allocation5 [shape = 's32[2]{0}', space=sflag, size = 0x8, scoped, tag = 'scoped memory for tpu_custom_call.1']
    #allocation6 [shape = 'u8[8192]{0}', space=vmem, size = 0x2000, scoped, tag = 'input window, operand 1']
    #allocation7 [shape = 's32[2]{0}', space=sflag, size = 0x8, scoped, tag = 'scoped memory for tpu_custom_call.1']
    #allocation8 [shape = 'u8[16384]{0}', space=vmem, size = 0x4000, scoped, tag = 'input window, operand 2, single buffered']
    #allocation9 [shape = 'u8[16384]{0}', space=vmem, size = 0x4000, scoped, tag = 'input window, operand 4, single buffered']
    #allocation10 [shape = 's32[1]{0}', space=sflag, size = 0x4, scoped, tag = 'scoped memory for tpu_custom_call.1']
    #allocation11 [shape = 'u8[16384]{0}', space=vmem, size = 0x4000, scoped, tag = 'input window, operand 6, single buffered']
    #allocation12 [shape = 'u8[16384]{0}', space=vmem, size = 0x4000, scoped, tag = 'input window, operand 7, single buffered']
    #allocation13 [shape = 's32[1]{0}', space=sflag, size = 0x4, scoped, tag = 'scoped memory for tpu_custom_call.1']
    #allocation14 [shape = 'u8[1024]{0}', space=vmem, size = 0x400, scoped, tag = 'output window, operand 0']
    %18 = vsyncpa [#allocation4], 0
    %s19 = scalar_lea.sflag [#allocation4], 1
    %20 = vsyncpa %s19, 0
    %21 = vsyncpa [#allocation7], 0
    %s22 = scalar_lea.sflag [#allocation7], 1
    %23 = vsyncpa %s22, 0
    %24 = vsyncpa [#allocation10], 0
    %25 = vsyncpa [#allocation13], 0
    %26 = vsyncpa [#allocation5], 0
    %s27 = scalar_lea.sflag [#allocation5], 1
    %28 = vsyncpa %s27, 0
    loop: start=0, step=1, limit=4
    $region2: #{tpu_custom_call.1} parent=1 // loop_pre_header
      _
    $region3: #{tpu_custom_call.1} parent=1 // loop_header
      %s30 = sphi 0, %s34
      %p31 = scmp.ge.s32.totalorder %s30, 4
      %s40 = sphi 0, %s42
      %s43 = sphi 0, %s40
      %s44 = sphi 0, %s43
      %s60 = sphi 0, %s44
      %s66 = sphi 0, %s68
      %s69 = sphi 0, %s66
      %s70 = sphi 0, %s69
      %s86 = sphi 0, %s70
      %s90 = sphi 0, %s90
      %s92 = sphi 0, %s90
      %s93 = sphi 0, %s92
      %s107 = sphi 0, %s93
      %s111 = sphi 0, %s111
      %s113 = sphi 0, %s111
      %s114 = sphi 0, %s113
      %s128 = sphi 0, %s114
      %s132 = sphi 0, %s132
      %s134 = sphi 0, %s132
      %s135 = sphi 0, %s134
      %s149 = sphi 0, %s135
      %s153 = sphi 0, %s153
      %s155 = sphi 0, %s153
      %s156 = sphi 0, %s155
      %s170 = sphi 0, %s156
      %s174 = sphi 0, %s174
      %s176 = sphi 0, %s174
      %s177 = sphi 0, %s176
      %s191 = sphi 0, %s177
      %s195 = sphi 0, %s195
      %s197 = sphi 0, %s195
      %s198 = sphi 0, %s197
      %s212 = sphi 0, %s198
      %s216 = sphi 0, %s216
      %s218 = sphi 0, %s216
      %s219 = sphi 0, %s218
      %s233 = sphi 0, %s219
      %s237 = sphi 0, %s237
      %s239 = sphi 0, %s237
      %s240 = sphi 0, %s239
      %s254 = sphi 0, %s240
      %s258 = sphi 0, %s258
      %s260 = sphi 0, %s258
      %s261 = sphi 0, %s260
      %s275 = sphi 0, %s261
      %s281 = sphi 0, %s283
      %s284 = sphi 0, %s281
      %s285 = sphi 0, %s284
      %s301 = sphi 0, %s285
    $region4: #{tpu_custom_call.1} parent=1 // loop_header_branch
      %33 = sbr.rel (%p31) target = $region8
    $region5: #{tpu_custom_call.1} parent=1 // loop_body
      %s35 = ssub.s32 %s30, 1
      %s36 = ssub.s32 %s30, 2
      %s37 = sadd.s32 %s30, 1
      %s38 = ssub.s32 %s30, %s37
      %p39 = scmp.eq.s32.totalorder %s38, 0
      %s41 = sadd.s32 %s40, 1
      %s42 = scalar_select %p39, %s40, %s41
      %p45 = pneg %p39
      %p46 = scmp.eq.s32.totalorder %s30, 1
      %p47 = por %p45, %p46
      %p48 = scmp.ne.s32.totalorder %s40, %s43
      %p49 = scmp.eq.s32.totalorder %s30, 0
      %p50 = por %p48, %p49
      %p51 = scmp.ne.s32.totalorder %s40, %s43
      %p52 = scmp.eq.s32.totalorder %s35, 1
      %p53 = por %p51, %p52
      %p54 = scmp.ne.s32.totalorder %s43, %s44
      %p55 = scmp.eq.s32.totalorder %s35, 0
      %p56 = por %p54, %p55
      %p57 = scmp.ne.s32.totalorder %s43, %s44
      %p58 = scmp.eq.s32.totalorder %s36, 1
      %p59 = por %p57, %p58
      %p61 = scmp.ne.s32.totalorder %s44, %s60
      %p62 = scmp.eq.s32.totalorder %s36, 0
      %p63 = por %p61, %p62
      %s64 = ssub.s32 %s30, %s37
      %p65 = scmp.eq.s32.totalorder %s64, 0
      %s67 = sadd.s32 %s66, 1
      %s68 = scalar_select %p65, %s66, %s67
      %p71 = pneg %p65
      %p72 = scmp.eq.s32.totalorder %s30, 1
      %p73 = por %p71, %p72
      %p74 = scmp.ne.s32.totalorder %s66, %s69
      %p75 = scmp.eq.s32.totalorder %s30, 0
      %p76 = por %p74, %p75
      %p77 = scmp.ne.s32.totalorder %s66, %s69
      %p78 = scmp.eq.s32.totalorder %s35, 1
      %p79 = por %p77, %p78
      %p80 = scmp.ne.s32.totalorder %s69, %s70
      %p81 = scmp.eq.s32.totalorder %s35, 0
      %p82 = por %p80, %p81
      %p83 = scmp.ne.s32.totalorder %s69, %s70
      %p84 = scmp.eq.s32.totalorder %s36, 1
      %p85 = por %p83, %p84
      %p87 = scmp.ne.s32.totalorder %s70, %s86
      %p88 = scmp.eq.s32.totalorder %s36, 0
      %p89 = por %p87, %p88
      %s91 = sadd.s32 %s90, 1
      %p94 = scmp.eq.s32.totalorder %s30, 1
      %p95 = scmp.ne.s32.totalorder %s90, %s92
      %p96 = scmp.eq.s32.totalorder %s30, 0
      %p97 = por %p95, %p96
      %p98 = scmp.ne.s32.totalorder %s90, %s92
      %p99 = scmp.eq.s32.totalorder %s35, 1
      %p100 = por %p98, %p99
      %p101 = scmp.ne.s32.totalorder %s92, %s93
      %p102 = scmp.eq.s32.totalorder %s35, 0
      %p103 = por %p101, %p102
      %p104 = scmp.ne.s32.totalorder %s92, %s93
      %p105 = scmp.eq.s32.totalorder %s36, 1
      %p106 = por %p104, %p105
      %p108 = scmp.ne.s32.totalorder %s93, %s107
      %p109 = scmp.eq.s32.totalorder %s36, 0
      %p110 = por %p108, %p109
      %s112 = sadd.s32 %s111, 1
      %p115 = scmp.eq.s32.totalorder %s30, 1
      %p116 = scmp.ne.s32.totalorder %s111, %s113
      %p117 = scmp.eq.s32.totalorder %s30, 0
      %p118 = por %p116, %p117
      %p119 = scmp.ne.s32.totalorder %s111, %s113
      %p120 = scmp.eq.s32.totalorder %s35, 1
      %p121 = por %p119, %p120
      %p122 = scmp.ne.s32.totalorder %s113, %s114
      %p123 = scmp.eq.s32.totalorder %s35, 0
      %p124 = por %p122, %p123
      %p125 = scmp.ne.s32.totalorder %s113, %s114
      %p126 = scmp.eq.s32.totalorder %s36, 1
      %p127 = por %p125, %p126
      %p129 = scmp.ne.s32.totalorder %s114, %s128
      %p130 = scmp.eq.s32.totalorder %s36, 0
      %p131 = por %p129, %p130
      %s133 = sadd.s32 %s132, 1
      %p136 = scmp.eq.s32.totalorder %s30, 1
      %p137 = scmp.ne.s32.totalorder %s132, %s134
      %p138 = scmp.eq.s32.totalorder %s30, 0
      %p139 = por %p137, %p138
      %p140 = scmp.ne.s32.totalorder %s132, %s134
      %p141 = scmp.eq.s32.totalorder %s35, 1
      %p142 = por %p140, %p141
      %p143 = scmp.ne.s32.totalorder %s134, %s135
      %p144 = scmp.eq.s32.totalorder %s35, 0
      %p145 = por %p143, %p144
      %p146 = scmp.ne.s32.totalorder %s134, %s135
      %p147 = scmp.eq.s32.totalorder %s36, 1
      %p148 = por %p146, %p147
      %p150 = scmp.ne.s32.totalorder %s135, %s149
      %p151 = scmp.eq.s32.totalorder %s36, 0
      %p152 = por %p150, %p151
      %s154 = sadd.s32 %s153, 1
      %p157 = scmp.eq.s32.totalorder %s30, 1
      %p158 = scmp.ne.s32.totalorder %s153, %s155
      %p159 = scmp.eq.s32.totalorder %s30, 0
      %p160 = por %p158, %p159
      %p161 = scmp.ne.s32.totalorder %s153, %s155
      %p162 = scmp.eq.s32.totalorder %s35, 1
      %p163 = por %p161, %p162
      %p164 = scmp.ne.s32.totalorder %s155, %s156
      %p165 = scmp.eq.s32.totalorder %s35, 0
      %p166 = por %p164, %p165
      %p167 = scmp.ne.s32.totalorder %s155, %s156
      %p168 = scmp.eq.s32.totalorder %s36, 1
      %p169 = por %p167, %p168
      %p171 = scmp.ne.s32.totalorder %s156, %s170
      %p172 = scmp.eq.s32.totalorder %s36, 0
      %p173 = por %p171, %p172
      %s175 = sadd.s32 %s174, 1
      %p178 = scmp.eq.s32.totalorder %s30, 1
      %p179 = scmp.ne.s32.totalorder %s174, %s176
      %p180 = scmp.eq.s32.totalorder %s30, 0
      %p181 = por %p179, %p180
      %p182 = scmp.ne.s32.totalorder %s174, %s176
      %p183 = scmp.eq.s32.totalorder %s35, 1
      %p184 = por %p182, %p183
      %p185 = scmp.ne.s32.totalorder %s176, %s177
      %p186 = scmp.eq.s32.totalorder %s35, 0
      %p187 = por %p185, %p186
      %p188 = scmp.ne.s32.totalorder %s176, %s177
      %p189 = scmp.eq.s32.totalorder %s36, 1
      %p190 = por %p188, %p189
      %p192 = scmp.ne.s32.totalorder %s177, %s191
      %p193 = scmp.eq.s32.totalorder %s36, 0
      %p194 = por %p192, %p193
      %s196 = sadd.s32 %s195, 1
      %p199 = scmp.eq.s32.totalorder %s30, 1
      %p200 = scmp.ne.s32.totalorder %s195, %s197
      %p201 = scmp.eq.s32.totalorder %s30, 0
      %p202 = por %p200, %p201
      %p203 = scmp.ne.s32.totalorder %s195, %s197
      %p204 = scmp.eq.s32.totalorder %s35, 1
      %p205 = por %p203, %p204
      %p206 = scmp.ne.s32.totalorder %s197, %s198
      %p207 = scmp.eq.s32.totalorder %s35, 0
      %p208 = por %p206, %p207
      %p209 = scmp.ne.s32.totalorder %s197, %s198
      %p210 = scmp.eq.s32.totalorder %s36, 1
      %p211 = por %p209, %p210
      %p213 = scmp.ne.s32.totalorder %s198, %s212
      %p214 = scmp.eq.s32.totalorder %s36, 0
      %p215 = por %p213, %p214
      %s217 = sadd.s32 %s216, 1
      %p220 = scmp.eq.s32.totalorder %s30, 1
      %p221 = scmp.ne.s32.totalorder %s216, %s218
      %p222 = scmp.eq.s32.totalorder %s30, 0
      %p223 = por %p221, %p222
      %p224 = scmp.ne.s32.totalorder %s216, %s218
      %p225 = scmp.eq.s32.totalorder %s35, 1
      %p226 = por %p224, %p225
      %p227 = scmp.ne.s32.totalorder %s218, %s219
      %p228 = scmp.eq.s32.totalorder %s35, 0
      %p229 = por %p227, %p228
      %p230 = scmp.ne.s32.totalorder %s218, %s219
      %p231 = scmp.eq.s32.totalorder %s36, 1
      %p232 = por %p230, %p231
      %p234 = scmp.ne.s32.totalorder %s219, %s233
      %p235 = scmp.eq.s32.totalorder %s36, 0
      %p236 = por %p234, %p235
      %s238 = sadd.s32 %s237, 1
      %p241 = scmp.eq.s32.totalorder %s30, 1
      %p242 = scmp.ne.s32.totalorder %s237, %s239
      %p243 = scmp.eq.s32.totalorder %s30, 0
      %p244 = por %p242, %p243
      %p245 = scmp.ne.s32.totalorder %s237, %s239
      %p246 = scmp.eq.s32.totalorder %s35, 1
      %p247 = por %p245, %p246
      %p248 = scmp.ne.s32.totalorder %s239, %s240
      %p249 = scmp.eq.s32.totalorder %s35, 0
      %p250 = por %p248, %p249
      %p251 = scmp.ne.s32.totalorder %s239, %s240
      %p252 = scmp.eq.s32.totalorder %s36, 1
      %p253 = por %p251, %p252
      %p255 = scmp.ne.s32.totalorder %s240, %s254
      %p256 = scmp.eq.s32.totalorder %s36, 0
      %p257 = por %p255, %p256
      %s259 = sadd.s32 %s258, 1
      %p262 = scmp.eq.s32.totalorder %s30, 1
      %p263 = scmp.ne.s32.totalorder %s258, %s260
      %p264 = scmp.eq.s32.totalorder %s30, 0
      %p265 = por %p263, %p264
      %p266 = scmp.ne.s32.totalorder %s258, %s260
      %p267 = scmp.eq.s32.totalorder %s35, 1
      %p268 = por %p266, %p267
      %p269 = scmp.ne.s32.totalorder %s260, %s261
      %p270 = scmp.eq.s32.totalorder %s35, 0
      %p271 = por %p269, %p270
      %p272 = scmp.ne.s32.totalorder %s260, %s261
      %p273 = scmp.eq.s32.totalorder %s36, 1
      %p274 = por %p272, %p273
      %p276 = scmp.ne.s32.totalorder %s261, %s275
      %p277 = scmp.eq.s32.totalorder %s36, 0
      %p278 = por %p276, %p277
      %s279 = ssub.s32 %s30, %s37
      %p280 = scmp.eq.s32.totalorder %s279, 0
      %s282 = sadd.s32 %s281, 1
      %s283 = scalar_select %p280, %s281, %s282
      %p286 = pneg %p280
      %p287 = scmp.eq.s32.totalorder %s30, 1
      %p288 = por %p286, %p287
      %p289 = scmp.ne.s32.totalorder %s281, %s284
      %p290 = scmp.eq.s32.totalorder %s30, 0
      %p291 = por %p289, %p290
      %p292 = scmp.ne.s32.totalorder %s281, %s284
      %p293 = scmp.eq.s32.totalorder %s35, 1
      %p294 = por %p292, %p293
      %p295 = scmp.ne.s32.totalorder %s284, %s285
      %p296 = scmp.eq.s32.totalorder %s35, 0
      %p297 = por %p295, %p296
      %p298 = scmp.ne.s32.totalorder %s284, %s285
      %p299 = scmp.eq.s32.totalorder %s36, 1
      %p300 = por %p298, %p299
      %p302 = scmp.ne.s32.totalorder %s285, %s301
      %p303 = scmp.eq.s32.totalorder %s36, 0
      %p304 = por %p302, %p303
      %p305 = scmp.le.s32.totalorder 1, %s30
      %p306 = scmp.lt.s32.totalorder %s30, 3
      %p307 = pnand %p305, %p306
      %p308 = pneg %p307
      // Predicated region
      $region9: #{tpu_custom_call.1} parent=5 // pred_check
        _
      $region10: #{tpu_custom_call.1} parent=5 // pred_check_branch
        %310 = sbr.rel (%p307) target = $region12
      $region11: #{tpu_custom_call.1} parent=5 // pred_region
        %s311 = ssub.s32 %s30, 1
        // Predicated region
        $region13: #{tpu_custom_call.1} parent=11 // pred_check
          %p312 = pneg %p103
        $region14: #{tpu_custom_call.1} parent=11 // pred_check_branch
          %314 = sbr.rel (%p312) target = $region16
        $region15: #{tpu_custom_call.1} parent=11 // pred_region
          %s316 = ssub.s32 512, 512
          %317 = vsyncadd [#allocation7], %s316
          %s318 = sshll.u32 [#allocation8], 4
          %s319 = int_to_ptr.vmem [resolvable:$true] %s318
          %324 = dma.hbm_to_vmem [thread:$0]  %s2, 512, %s319, [#allocation7], 128, 128, 8
        $region16: #{tpu_custom_call.1} parent=11 // pred_fallthru
          _
        // Predicated region
        $region17: #{tpu_custom_call.1} parent=11 // pred_check
          %p325 = pneg %p124
        $region18: #{tpu_custom_call.1} parent=11 // pred_check_branch
          %327 = sbr.rel (%p325) target = $region20
        $region19: #{tpu_custom_call.1} parent=11 // pred_region
          _
        $region20: #{tpu_custom_call.1} parent=11 // pred_fallthru
          _
        // Predicated region
        $region21: #{tpu_custom_call.1} parent=11 // pred_check
          %p328 = pneg %p145
        $region22: #{tpu_custom_call.1} parent=11 // pred_check_branch
          %330 = sbr.rel (%p328) target = $region24
        $region23: #{tpu_custom_call.1} parent=11 // pred_region
          %s332 = ssub.s32 512, 512
          %333 = vsyncadd [#allocation10], %s332
          %s334 = sshll.u32 [#allocation9], 4
          %s335 = int_to_ptr.vmem [resolvable:$true] %s334
          %340 = dma.hbm_to_vmem [thread:$0]  %s4, 512, %s335, [#allocation10], 128, 128, 8
        $region24: #{tpu_custom_call.1} parent=11 // pred_fallthru
          _
        // Predicated region
        $region25: #{tpu_custom_call.1} parent=11 // pred_check
          %p341 = pneg %p166
        $region26: #{tpu_custom_call.1} parent=11 // pred_check_branch
          %343 = sbr.rel (%p341) target = $region28
        $region27: #{tpu_custom_call.1} parent=11 // pred_region
          _
        $region28: #{tpu_custom_call.1} parent=11 // pred_fallthru
          _
        // Predicated region
        $region29: #{tpu_custom_call.1} parent=11 // pred_check
          %p344 = pneg %p187
        $region30: #{tpu_custom_call.1} parent=11 // pred_check_branch
          %346 = sbr.rel (%p344) target = $region32
        $region31: #{tpu_custom_call.1} parent=11 // pred_region
          %s348 = ssub.s32 512, 512
          %349 = vsyncadd [#allocation10], %s348
          %s350 = sshll.u32 [#allocation11], 4
          %s351 = int_to_ptr.vmem [resolvable:$true] %s350
          %356 = dma.hbm_to_vmem [thread:$0]  %s6, 512, %s351, [#allocation10], 128, 128, 8
        $region32: #{tpu_custom_call.1} parent=11 // pred_fallthru
          _
        // Predicated region
        $region33: #{tpu_custom_call.1} parent=11 // pred_check
          %p357 = pneg %p208
        $region34: #{tpu_custom_call.1} parent=11 // pred_check_branch
          %359 = sbr.rel (%p357) target = $region36
        $region35: #{tpu_custom_call.1} parent=11 // pred_region
          %s361 = ssub.s32 512, 512
          %362 = vsyncadd [#allocation13], %s361
          %s363 = sshll.u32 [#allocation12], 4
          %s364 = int_to_ptr.vmem [resolvable:$true] %s363
          %369 = dma.hbm_to_vmem [thread:$0]  %s7, 512, %s364, [#allocation13], 128, 128, 8
        $region36: #{tpu_custom_call.1} parent=11 // pred_fallthru
          _
        // Predicated region
        $region37: #{tpu_custom_call.1} parent=11 // pred_check
          %p370 = pneg %p229
        $region38: #{tpu_custom_call.1} parent=11 // pred_check_branch
          %372 = sbr.rel (%p370) target = $region40
        $region39: #{tpu_custom_call.1} parent=11 // pred_region
          _
        $region40: #{tpu_custom_call.1} parent=11 // pred_fallthru
          _
        // Predicated region
        $region41: #{tpu_custom_call.1} parent=11 // pred_check
          %p373 = pneg %p250
        $region42: #{tpu_custom_call.1} parent=11 // pred_check_branch
          %375 = sbr.rel (%p373) target = $region44
        $region43: #{tpu_custom_call.1} parent=11 // pred_region
          _
        $region44: #{tpu_custom_call.1} parent=11 // pred_fallthru
          _
        // Predicated region
        $region45: #{tpu_custom_call.1} parent=11 // pred_check
          %p376 = pneg %p271
        $region46: #{tpu_custom_call.1} parent=11 // pred_check_branch
          %378 = sbr.rel (%p376) target = $region48
        $region47: #{tpu_custom_call.1} parent=11 // pred_region
          _
        $region48: #{tpu_custom_call.1} parent=11 // pred_fallthru
          _
      $region12: #{tpu_custom_call.1} parent=5 // pred_fallthru
        _
      %p379 = scmp.lt.s32.totalorder %s30, 2
      // Predicated region
      $region49: #{tpu_custom_call.1} parent=5 // pred_check
        %p380 = pneg %p379
      $region50: #{tpu_custom_call.1} parent=5 // pred_check_branch
        %382 = sbr.rel (%p380) target = $region52
      $region51: #{tpu_custom_call.1} parent=5 // pred_region
        // Predicated region
        $region53: #{tpu_custom_call.1} parent=51 // pred_check
          %p383 = pneg %p50
        $region54: #{tpu_custom_call.1} parent=51 // pred_check_branch
          %385 = sbr.rel (%p383) target = $region56
        $region55: #{tpu_custom_call.1} parent=51 // pred_region
          %s386 = sand.u32 %s40, 1
          %s387 = scalar_lea.sflag [#allocation4], %s386
          %s388 = sand.u32 %s40, 1
          %s389 = smul.addr %s388, 8
          %s390 = scalar_lea.vmem [#allocation3], %s389
          %s392 = ssub.s32 128, 128
          %393 = vsyncadd %s387, %s392
          %s394 = smul.addr %s30, 128
          %s395 = scalar_lea.hbm %s0, %s394
          %s397 = sshll.u32 %s390, 4
          %s398 = int_to_ptr.vmem [resolvable:$true] %s397
          %400 = dma.hbm_to_vmem [thread:$0]  %s395, 128, %s398, %s387
        $region56: #{tpu_custom_call.1} parent=51 // pred_fallthru
          _
        // Predicated region
        $region57: #{tpu_custom_call.1} parent=51 // pred_check
          %p401 = pneg %p76
        $region58: #{tpu_custom_call.1} parent=51 // pred_check_branch
          %403 = sbr.rel (%p401) target = $region60
        $region59: #{tpu_custom_call.1} parent=51 // pred_region
          %s404 = sand.u32 %s30, 1
          %s405 = scalar_lea.sflag [#allocation7], %s404
          %s406 = sand.u32 %s66, 1
          %s407 = smul.addr %s406, 8
          %s408 = scalar_lea.vmem [#allocation6], %s407
          %s410 = ssub.s32 128, 128
          %411 = vsyncadd %s405, %s410
          %s412 = smul.addr %s30, 128
          %s413 = scalar_lea.hbm %s1, %s412
          %s415 = sshll.u32 %s408, 4
          %s416 = int_to_ptr.vmem [resolvable:$true] %s415
          %418 = dma.hbm_to_vmem [thread:$0]  %s413, 128, %s416, %s405
        $region60: #{tpu_custom_call.1} parent=51 // pred_fallthru
          _
      $region52: #{tpu_custom_call.1} parent=5 // pred_fallthru
        _
      %p419 = scmp.le.s32.totalorder 1, %s30
      %p420 = scmp.lt.s32.totalorder %s30, 3
      %p421 = pnand %p419, %p420
      %p422 = pneg %p421
      // Predicated region
      $region61: #{tpu_custom_call.1} parent=5 // pred_check
        _
      $region62: #{tpu_custom_call.1} parent=5 // pred_check_branch
        %424 = sbr.rel (%p421) target = $region64
      $region63: #{tpu_custom_call.1} parent=5 // pred_region
        %s425 = ssub.s32 %s30, 1
        %s426 = sand.u32 %s43, 1
        %s427 = scalar_lea.sflag [#allocation4], %s426
        %s428 = sand.u32 %s43, 1
        %s429 = smul.addr %s428, 8
        %s430 = scalar_lea.vmem [#allocation3], %s429
        // Predicated region
        $region65: #{tpu_custom_call.1} parent=63 // pred_check
          %p431 = pneg %p56
        $region66: #{tpu_custom_call.1} parent=63 // pred_check_branch
          %433 = sbr.rel (%p431) target = $region68
        $region67: #{tpu_custom_call.1} parent=63 // pred_region
          %434 = dma.done %s427, 128
        $region68: #{tpu_custom_call.1} parent=63 // pred_fallthru
          _
        %s435 = sand.u32 %s35, 1
        %s436 = scalar_lea.sflag [#allocation7], %s435
        %s437 = sand.u32 %s69, 1
        %s438 = smul.addr %s437, 8
        %s439 = scalar_lea.vmem [#allocation6], %s438
        // Predicated region
        $region69: #{tpu_custom_call.1} parent=63 // pred_check
          %p440 = pneg %p82
        $region70: #{tpu_custom_call.1} parent=63 // pred_check_branch
          %442 = sbr.rel (%p440) target = $region72
        $region71: #{tpu_custom_call.1} parent=63 // pred_region
          %443 = dma.done %s436, 128
        $region72: #{tpu_custom_call.1} parent=63 // pred_fallthru
          _
        // Predicated region
        $region73: #{tpu_custom_call.1} parent=63 // pred_check
          %p444 = pneg %p103
        $region74: #{tpu_custom_call.1} parent=63 // pred_check_branch
          %446 = sbr.rel (%p444) target = $region76
        $region75: #{tpu_custom_call.1} parent=63 // pred_region
          %447 = dma.done [#allocation7], 512
        $region76: #{tpu_custom_call.1} parent=63 // pred_fallthru
          _
        // Predicated region
        $region77: #{tpu_custom_call.1} parent=63 // pred_check
          %p448 = pneg %p145
        $region78: #{tpu_custom_call.1} parent=63 // pred_check_branch
          %450 = sbr.rel (%p448) target = $region80
        $region79: #{tpu_custom_call.1} parent=63 // pred_region
          %451 = dma.done [#allocation10], 512
        $region80: #{tpu_custom_call.1} parent=63 // pred_fallthru
          _
        // Predicated region
        $region81: #{tpu_custom_call.1} parent=63 // pred_check
          %p452 = pneg %p187
        $region82: #{tpu_custom_call.1} parent=63 // pred_check_branch
          %454 = sbr.rel (%p452) target = $region84
        $region83: #{tpu_custom_call.1} parent=63 // pred_region
          %455 = dma.done [#allocation10], 512
        $region84: #{tpu_custom_call.1} parent=63 // pred_fallthru
          _
        // Predicated region
        $region85: #{tpu_custom_call.1} parent=63 // pred_check
          %p456 = pneg %p208
        $region86: #{tpu_custom_call.1} parent=63 // pred_check_branch
          %458 = sbr.rel (%p456) target = $region88
        $region87: #{tpu_custom_call.1} parent=63 // pred_region
          %459 = dma.done [#allocation13], 512
        $region88: #{tpu_custom_call.1} parent=63 // pred_fallthru
          _
        %s460 = sand.u32 %s43, 1
        %s461 = scalar_lea.sflag [#allocation4], %s460
        %s462 = sand.u32 %s43, 1
        %s463 = smul.addr %s462, 8
        %s464 = scalar_lea.vmem [#allocation3], %s463
        %p465 = pneg %p56
        %p466 = pneg %p53
        %s467 = sand.u32 %s35, 1
        %s468 = scalar_lea.sflag [#allocation7], %s467
        %s469 = sand.u32 %s69, 1
        %s470 = smul.addr %s469, 8
        %s471 = scalar_lea.vmem [#allocation6], %s470
        %p472 = pneg %p82
        %p473 = pneg %p79
        %p474 = pneg %p103
        %p475 = pneg %p100
        %p476 = pneg %p124
        %p477 = pneg %p121
        %p478 = pneg %p145
        %p479 = pneg %p142
        %p480 = pneg %p166
        %p481 = pneg %p163
        %p482 = pneg %p187
        %p483 = pneg %p184
        %p484 = pneg %p208
        %p485 = pneg %p205
        %p486 = pneg %p229
        %p487 = pneg %p226
        %p488 = pneg %p250
        %p489 = pneg %p247
        %p490 = pneg %p271
        %p491 = pneg %p268
        %p492 = pneg %p297
        %p493 = pneg %p294
        %s494 = sand.u32 %s284, 1
        %s495 = scalar_lea.sflag [#allocation5], %s494
        %s496 = sand.u32 %s284, 1
        %s497 = scalar_lea.vmem [#allocation14], %s496
        %v498 = vld [vmem:[%s430] sm:$0xff]
        %v499 = vld [vmem:[%s439] sm:$0xff]
        %v500 = vld [vmem:[#allocation8] sm:$0xff]
        %v501 = vld [vmem:[#allocation8 + $0x8] sm:$0xff]
        %v502 = vld [vmem:[#allocation8 + $0x10] sm:$0xff]
        %v503 = vld [vmem:[#allocation8 + $0x18] sm:$0xff]
        %v504 = vld [vmem:[%s3] sm:$0x1]
        %v506 = vlaneseq
        %v507 = vshrl.u32 %v506, 7
        %v508 = vsub.s32 0, %v507
        %v509 = vrot.slane %v504, %v508
        %vm511 = vcmask 261120
        %v513 = vsel %vm511, %v498, 0
        %515 = vmatprep.subr.mxu0 0.0
        %v516 = vand.u32 %v500, 4294901760
        %517 = vmatpush1.msra.mxu0 %v516
        %518 = vmatprep.subr.mxu0 0.0
        %v519 = vand.u32 %v501, 4294901760
        %520 = vmatpush1.msra.mxu0 %v519
        %521 = vmatprep.subr.mxu0 0.0
        %v522 = vand.u32 %v502, 4294901760
        %523 = vmatpush1.msra.mxu0 %v522
        %524 = vmatprep.subr.mxu0 0.0
        %v525 = vand.u32 %v503, 4294901760
        %526 = vmatpush1.msra.mxu0 %v525
        %527 = vmatprep.subr.mxu0 0.0
        %528 = vmatpush1.msra.mxu0 0.0
        %529 = vmatprep.subr.mxu0 0.0
        %530 = vmatpush1.msra.mxu0 0.0
        %531 = vmatprep.subr.mxu0 0.0
        %532 = vmatpush1.msra.mxu0 0.0
        %533 = vmatprep.subr.mxu0 0.0
        %534 = vmatpush1.msra.mxu0 0.0
        %535 = vmatprep.subr.mxu0 0.0
        %536 = vmatpush1.msra.mxu0 0.0
        %537 = vmatprep.subr.mxu0 0.0
        %538 = vmatpush1.msra.mxu0 0.0
        %539 = vmatprep.subr.mxu0 0.0
        %540 = vmatpush1.msra.mxu0 0.0
        %541 = vmatprep.subr.mxu0 0.0
        %542 = vmatpush1.msra.mxu0 0.0
        %543 = vmatprep.subr.mxu0 0.0
        %544 = vmatpush1.msra.mxu0 0.0
        %545 = vmatprep.subr.mxu0 0.0
        %546 = vmatpush1.msra.mxu0 0.0
        %547 = vmatprep.subr.mxu0 0.0
        %548 = vmatpush1.msra.mxu0 0.0
        %549 = vmatprep.subr.mxu0 0.0
        %550 = vmatpush1.msra.mxu0 0.0
        %551 = vmatprep.subr.mxu0 0.0
        %552 = vmatpush1.msra.mxu0 0.0
        %553 = vmatprep.subr.mxu0 0.0
        %554 = vmatpush1.msra.mxu0 0.0
        %555 = vmatprep.subr.mxu0 0.0
        %556 = vmatpush1.msra.mxu0 0.0
        %557 = vmatprep.subr.mxu0 0.0
        %558 = vmatpush1.msra.mxu0 0.0
        %559 = vmatprep.subr.mxu0 0.0
        %560 = vmatpush1.msra.mxu0 0.0
        %561 = vmatprep.subr.mxu0 0.0
        %562 = vmatpush1.msra.mxu0 0.0
        %563 = vmatprep.subr.mxu0 0.0
        %564 = vmatpush1.msra.mxu0 0.0
        %565 = vmatprep.subr.mxu0 0.0
        %566 = vmatpush1.msra.mxu0 0.0
        %567 = vmatprep.subr.mxu0 0.0
        %568 = vmatpush1.msra.mxu0 0.0
        %569 = vmatprep.subr.mxu0 0.0
        %570 = vmatpush1.msra.mxu0 0.0
        %571 = vmatprep.subr.mxu0 0.0
        %572 = vmatpush1.msra.mxu0 0.0
        %573 = vmatprep.subr.mxu0 0.0
        %574 = vmatpush1.msra.mxu0 0.0
        %575 = vmatprep.subr.mxu0 0.0
        %576 = vmatpush1.msra.mxu0 0.0
        %577 = vmatprep.subr.mxu0 0.0
        %578 = vmatpush1.msra.mxu0 0.0
        %579 = vmatprep.subr.mxu0 0.0
        %580 = vmatpush1.msra.mxu0 0.0
        %581 = vmatprep.subr.mxu0 0.0
        %582 = vmatpush1.msra.mxu0 0.0
        %583 = vmatprep.mubr.f32.mxu0 0.0
        %v584 = vand.u32 %v513, 4294901760
        %v585 = vsub.f32 %v513, %v584
        %v586 = vand.u32 %v585, 4294901760
        %v587 = vsub.f32 %v585, %v586
        %v588 = vand.u32 %v587, 4294901760
        %589 = vmatmul.mubr.f32.gmra.mrb[0].mxu0 %v588
        %v590 = vpop.f32.mrb[0].mxu0
        %v591 = vadd.f32 %v509, %v590
        %v592 = vpop.f32.mrb[0].mxu0
        %593 = vdwg.mxu0
        %594 = vmatprep.subr.mxu0 0.0
        %v595 = vand.u32 %v500, 4294901760
        %v596 = vsub.f32 %v500, %v595
        %v597 = vand.u32 %v596, 4294901760
        %v598 = vsub.f32 %v596, %v597
        %v599 = vand.u32 %v598, 4294901760
        %600 = vmatpush1.msra.mxu0 %v599
        %601 = vmatprep.subr.mxu0 0.0
        %v602 = vand.u32 %v501, 4294901760
        %v603 = vsub.f32 %v501, %v602
        %v604 = vand.u32 %v603, 4294901760
        %v605 = vsub.f32 %v603, %v604
        %v606 = vand.u32 %v605, 4294901760
        %607 = vmatpush1.msra.mxu0 %v606
        %608 = vmatprep.subr.mxu0 0.0
        %v609 = vand.u32 %v502, 4294901760
        %v610 = vsub.f32 %v502, %v609
        %v611 = vand.u32 %v610, 4294901760
        %v612 = vsub.f32 %v610, %v611
        %v613 = vand.u32 %v612, 4294901760
        %614 = vmatpush1.msra.mxu0 %v613
        %615 = vmatprep.subr.mxu0 0.0
        %v616 = vand.u32 %v503, 4294901760
        %v617 = vsub.f32 %v503, %v616
        %v618 = vand.u32 %v617, 4294901760
        %v619 = vsub.f32 %v617, %v618
        %v620 = vand.u32 %v619, 4294901760
        %621 = vmatpush1.msra.mxu0 %v620
        %622 = vmatprep.subr.mxu0 0.0
        %623 = vmatpush1.msra.mxu0 0.0
        %624 = vmatprep.subr.mxu0 0.0
        %625 = vmatpush1.msra.mxu0 0.0
        %626 = vmatprep.subr.mxu0 0.0
        %627 = vmatpush1.msra.mxu0 0.0
        %628 = vmatprep.subr.mxu0 0.0
        %629 = vmatpush1.msra.mxu0 0.0
        %630 = vmatprep.subr.mxu0 0.0
        %631 = vmatpush1.msra.mxu0 0.0
        %632 = vmatprep.subr.mxu0 0.0
        %633 = vmatpush1.msra.mxu0 0.0
        %634 = vmatprep.subr.mxu0 0.0
        %635 = vmatpush1.msra.mxu0 0.0
        %636 = vmatprep.subr.mxu0 0.0
        %637 = vmatpush1.msra.mxu0 0.0
        %638 = vmatprep.subr.mxu0 0.0
        %639 = vmatpush1.msra.mxu0 0.0
        %640 = vmatprep.subr.mxu0 0.0
        %641 = vmatpush1.msra.mxu0 0.0
        %642 = vmatprep.subr.mxu0 0.0
        %643 = vmatpush1.msra.mxu0 0.0
        %644 = vmatprep.subr.mxu0 0.0
        %645 = vmatpush1.msra.mxu0 0.0
        %646 = vmatprep.subr.mxu0 0.0
        %647 = vmatpush1.msra.mxu0 0.0
        %648 = vmatprep.subr.mxu0 0.0
        %649 = vmatpush1.msra.mxu0 0.0
        %650 = vmatprep.subr.mxu0 0.0
        %651 = vmatpush1.msra.mxu0 0.0
        %652 = vmatprep.subr.mxu0 0.0
        %653 = vmatpush1.msra.mxu0 0.0
        %654 = vmatprep.subr.mxu0 0.0
        %655 = vmatpush1.msra.mxu0 0.0
        %656 = vmatprep.subr.mxu0 0.0
        %657 = vmatpush1.msra.mxu0 0.0
        %658 = vmatprep.subr.mxu0 0.0
        %659 = vmatpush1.msra.mxu0 0.0
        %660 = vmatprep.subr.mxu0 0.0
        %661 = vmatpush1.msra.mxu0 0.0
        %662 = vmatprep.subr.mxu0 0.0
        %663 = vmatpush1.msra.mxu0 0.0
        %664 = vmatprep.subr.mxu0 0.0
        %665 = vmatpush1.msra.mxu0 0.0
        %666 = vmatprep.subr.mxu0 0.0
        %667 = vmatpush1.msra.mxu0 0.0
        %668 = vmatprep.subr.mxu0 0.0
        %669 = vmatpush1.msra.mxu0 0.0
        %670 = vmatprep.subr.mxu0 0.0
        %671 = vmatpush1.msra.mxu0 0.0
        %672 = vmatprep.subr.mxu0 0.0
        %673 = vmatpush1.msra.mxu0 0.0
        %674 = vmatprep.subr.mxu0 0.0
        %675 = vmatpush1.msra.mxu0 0.0
        %676 = vmatprep.subr.mxu0 0.0
        %677 = vmatpush1.msra.mxu0 0.0
        %678 = vmatprep.mubr.f32.mxu0 0.0
        %v679 = vand.u32 %v513, 4294901760
        %680 = vmatmul.mubr.f32.gmra.mrb[0].mxu0 %v679
        %v681 = vpop.f32.mrb[0].mxu0
        %v682 = vadd.f32 %v591, %v681
        %v683 = vpop.f32.mrb[0].mxu0
        %684 = vdwg.mxu0
        %685 = vmatprep.subr.mxu0 0.0
        %v686 = vand.u32 %v500, 4294901760
        %v687 = vsub.f32 %v500, %v686
        %688 = vmatpush1.msra.mxu0 %v687
        %689 = vmatprep.subr.mxu0 0.0
        %v690 = vand.u32 %v501, 4294901760
        %v691 = vsub.f32 %v501, %v690
        %692 = vmatpush1.msra.mxu0 %v691
        %693 = vmatprep.subr.mxu0 0.0
        %v694 = vand.u32 %v502, 4294901760
        %v695 = vsub.f32 %v502, %v694
        %696 = vmatpush1.msra.mxu0 %v695
        %697 = vmatprep.subr.mxu0 0.0
        %v698 = vand.u32 %v503, 4294901760
        %v699 = vsub.f32 %v503, %v698
        %700 = vmatpush1.msra.mxu0 %v699
        %701 = vmatprep.subr.mxu0 0.0
        %702 = vmatpush1.msra.mxu0 0.0
        %703 = vmatprep.subr.mxu0 0.0
        %704 = vmatpush1.msra.mxu0 0.0
        %705 = vmatprep.subr.mxu0 0.0
        %706 = vmatpush1.msra.mxu0 0.0
        %707 = vmatprep.subr.mxu0 0.0
        %708 = vmatpush1.msra.mxu0 0.0
        %709 = vmatprep.subr.mxu0 0.0
        %710 = vmatpush1.msra.mxu0 0.0
        %711 = vmatprep.subr.mxu0 0.0
        %712 = vmatpush1.msra.mxu0 0.0
        %713 = vmatprep.subr.mxu0 0.0
        %714 = vmatpush1.msra.mxu0 0.0
        %715 = vmatprep.subr.mxu0 0.0
        %716 = vmatpush1.msra.mxu0 0.0
        %717 = vmatprep.subr.mxu0 0.0
        %718 = vmatpush1.msra.mxu0 0.0
        %719 = vmatprep.subr.mxu0 0.0
        %720 = vmatpush1.msra.mxu0 0.0
        %721 = vmatprep.subr.mxu0 0.0
        %722 = vmatpush1.msra.mxu0 0.0
        %723 = vmatprep.subr.mxu0 0.0
        %724 = vmatpush1.msra.mxu0 0.0
        %725 = vmatprep.subr.mxu0 0.0
        %726 = vmatpush1.msra.mxu0 0.0
        %727 = vmatprep.subr.mxu0 0.0
        %728 = vmatpush1.msra.mxu0 0.0
        %729 = vmatprep.subr.mxu0 0.0
        %730 = vmatpush1.msra.mxu0 0.0
        %731 = vmatprep.subr.mxu0 0.0
        %732 = vmatpush1.msra.mxu0 0.0
        %733 = vmatprep.subr.mxu0 0.0
        %734 = vmatpush1.msra.mxu0 0.0
        %735 = vmatprep.subr.mxu0 0.0
        %736 = vmatpush1.msra.mxu0 0.0
        %737 = vmatprep.subr.mxu0 0.0
        %738 = vmatpush1.msra.mxu0 0.0
        %739 = vmatprep.subr.mxu0 0.0
        %740 = vmatpush1.msra.mxu0 0.0
        %741 = vmatprep.subr.mxu0 0.0
        %742 = vmatpush1.msra.mxu0 0.0
        %743 = vmatprep.subr.mxu0 0.0
        %744 = vmatpush1.msra.mxu0 0.0
        %745 = vmatprep.subr.mxu0 0.0
        %746 = vmatpush1.msra.mxu0 0.0
        %747 = vmatprep.subr.mxu0 0.0
        %748 = vmatpush1.msra.mxu0 0.0
        %749 = vmatprep.subr.mxu0 0.0
        %750 = vmatpush1.msra.mxu0 0.0
        %751 = vmatprep.subr.mxu0 0.0
        %752 = vmatpush1.msra.mxu0 0.0
        %753 = vmatprep.subr.mxu0 0.0
        %754 = vmatpush1.msra.mxu0 0.0
        %755 = vmatprep.subr.mxu0 0.0
        %756 = vmatpush1.msra.mxu0 0.0
        %757 = vmatprep.mubr.f32.mxu0 0.0
        %v758 = vand.u32 %v513, 4294901760
        %v759 = vsub.f32 %v513, %v758
        %760 = vmatmul.mubr.f32.gmra.mrb[0].mxu0 %v759
        %v761 = vpop.f32.mrb[0].mxu0
        %v762 = vadd.f32 %v682, %v761
        %v763 = vpop.f32.mrb[0].mxu0
        %764 = vdwg.mxu0
        %765 = vmatprep.subr.mxu0 0.0
        %v766 = vand.u32 %v500, 4294901760
        %767 = vmatpush1.msra.mxu0 %v766
        %768 = vmatprep.subr.mxu0 0.0
        %v769 = vand.u32 %v501, 4294901760
        %770 = vmatpush1.msra.mxu0 %v769
        %771 = vmatprep.subr.mxu0 0.0
        %v772 = vand.u32 %v502, 4294901760
        %773 = vmatpush1.msra.mxu0 %v772
        %774 = vmatprep.subr.mxu0 0.0
        %v775 = vand.u32 %v503, 4294901760
        %776 = vmatpush1.msra.mxu0 %v775
        %777 = vmatprep.subr.mxu0 0.0
        %778 = vmatpush1.msra.mxu0 0.0
        %779 = vmatprep.subr.mxu0 0.0
        %780 = vmatpush1.msra.mxu0 0.0
        %781 = vmatprep.subr.mxu0 0.0
        %782 = vmatpush1.msra.mxu0 0.0
        %783 = vmatprep.subr.mxu0 0.0
        %784 = vmatpush1.msra.mxu0 0.0
        %785 = vmatprep.subr.mxu0 0.0
        %786 = vmatpush1.msra.mxu0 0.0
        %787 = vmatprep.subr.mxu0 0.0
        %788 = vmatpush1.msra.mxu0 0.0
        %789 = vmatprep.subr.mxu0 0.0
        %790 = vmatpush1.msra.mxu0 0.0
        %791 = vmatprep.subr.mxu0 0.0
        %792 = vmatpush1.msra.mxu0 0.0
        %793 = vmatprep.subr.mxu0 0.0
        %794 = vmatpush1.msra.mxu0 0.0
        %795 = vmatprep.subr.mxu0 0.0
        %796 = vmatpush1.msra.mxu0 0.0
        %797 = vmatprep.subr.mxu0 0.0
        %798 = vmatpush1.msra.mxu0 0.0
        %799 = vmatprep.subr.mxu0 0.0
        %800 = vmatpush1.msra.mxu0 0.0
        %801 = vmatprep.subr.mxu0 0.0
        %802 = vmatpush1.msra.mxu0 0.0
        %803 = vmatprep.subr.mxu0 0.0
        %804 = vmatpush1.msra.mxu0 0.0
        %805 = vmatprep.subr.mxu0 0.0
        %806 = vmatpush1.msra.mxu0 0.0
        %807 = vmatprep.subr.mxu0 0.0
        %808 = vmatpush1.msra.mxu0 0.0
        %809 = vmatprep.subr.mxu0 0.0
        %810 = vmatpush1.msra.mxu0 0.0
        %811 = vmatprep.subr.mxu0 0.0
        %812 = vmatpush1.msra.mxu0 0.0
        %813 = vmatprep.subr.mxu0 0.0
        %814 = vmatpush1.msra.mxu0 0.0
        %815 = vmatprep.subr.mxu0 0.0
        %816 = vmatpush1.msra.mxu0 0.0
        %817 = vmatprep.subr.mxu0 0.0
        %818 = vmatpush1.msra.mxu0 0.0
        %819 = vmatprep.subr.mxu0 0.0
        %820 = vmatpush1.msra.mxu0 0.0
        %821 = vmatprep.subr.mxu0 0.0
        %822 = vmatpush1.msra.mxu0 0.0
        %823 = vmatprep.subr.mxu0 0.0
        %824 = vmatpush1.msra.mxu0 0.0
        %825 = vmatprep.subr.mxu0 0.0
        %826 = vmatpush1.msra.mxu0 0.0
        %827 = vmatprep.subr.mxu0 0.0
        %828 = vmatpush1.msra.mxu0 0.0
        %829 = vmatprep.subr.mxu0 0.0
        %830 = vmatpush1.msra.mxu0 0.0
        %831 = vmatprep.subr.mxu0 0.0
        %832 = vmatpush1.msra.mxu0 0.0
        %833 = vmatprep.mubr.f32.mxu0 0.0
        %v834 = vand.u32 %v513, 4294901760
        %v835 = vsub.f32 %v513, %v834
        %v836 = vand.u32 %v835, 4294901760
        %837 = vmatmul.mubr.f32.gmra.mrb[0].mxu0 %v836
        %v838 = vpop.f32.mrb[0].mxu0
        %v839 = vadd.f32 %v762, %v838
        %v840 = vpop.f32.mrb[0].mxu0
        %841 = vdwg.mxu0
        %842 = vmatprep.subr.mxu0 0.0
        %v843 = vand.u32 %v500, 4294901760
        %v844 = vsub.f32 %v500, %v843
        %v845 = vand.u32 %v844, 4294901760
        %846 = vmatpush1.msra.mxu0 %v845
        %847 = vmatprep.subr.mxu0 0.0
        %v848 = vand.u32 %v501, 4294901760
        %v849 = vsub.f32 %v501, %v848
        %v850 = vand.u32 %v849, 4294901760
        %851 = vmatpush1.msra.mxu0 %v850
        %852 = vmatprep.subr.mxu0 0.0
        %v853 = vand.u32 %v502, 4294901760
        %v854 = vsub.f32 %v502, %v853
        %v855 = vand.u32 %v854, 4294901760
        %856 = vmatpush1.msra.mxu0 %v855
        %857 = vmatprep.subr.mxu0 0.0
        %v858 = vand.u32 %v503, 4294901760
        %v859 = vsub.f32 %v503, %v858
        %v860 = vand.u32 %v859, 4294901760
        %861 = vmatpush1.msra.mxu0 %v860
        %862 = vmatprep.subr.mxu0 0.0
        %863 = vmatpush1.msra.mxu0 0.0
        %864 = vmatprep.subr.mxu0 0.0
        %865 = vmatpush1.msra.mxu0 0.0
        %866 = vmatprep.subr.mxu0 0.0
        %867 = vmatpush1.msra.mxu0 0.0
        %868 = vmatprep.subr.mxu0 0.0
        %869 = vmatpush1.msra.mxu0 0.0
        %870 = vmatprep.subr.mxu0 0.0
        %871 = vmatpush1.msra.mxu0 0.0
        %872 = vmatprep.subr.mxu0 0.0
        %873 = vmatpush1.msra.mxu0 0.0
        %874 = vmatprep.subr.mxu0 0.0
        %875 = vmatpush1.msra.mxu0 0.0
        %876 = vmatprep.subr.mxu0 0.0
        %877 = vmatpush1.msra.mxu0 0.0
        %878 = vmatprep.subr.mxu0 0.0
        %879 = vmatpush1.msra.mxu0 0.0
        %880 = vmatprep.subr.mxu0 0.0
        %881 = vmatpush1.msra.mxu0 0.0
        %882 = vmatprep.subr.mxu0 0.0
        %883 = vmatpush1.msra.mxu0 0.0
        %884 = vmatprep.subr.mxu0 0.0
        %885 = vmatpush1.msra.mxu0 0.0
        %886 = vmatprep.subr.mxu0 0.0
        %887 = vmatpush1.msra.mxu0 0.0
        %888 = vmatprep.subr.mxu0 0.0
        %889 = vmatpush1.msra.mxu0 0.0
        %890 = vmatprep.subr.mxu0 0.0
        %891 = vmatpush1.msra.mxu0 0.0
        %892 = vmatprep.subr.mxu0 0.0
        %893 = vmatpush1.msra.mxu0 0.0
        %894 = vmatprep.subr.mxu0 0.0
        %895 = vmatpush1.msra.mxu0 0.0
        %896 = vmatprep.subr.mxu0 0.0
        %897 = vmatpush1.msra.mxu0 0.0
        %898 = vmatprep.subr.mxu0 0.0
        %899 = vmatpush1.msra.mxu0 0.0
        %900 = vmatprep.subr.mxu0 0.0
        %901 = vmatpush1.msra.mxu0 0.0
        %902 = vmatprep.subr.mxu0 0.0
        %903 = vmatpush1.msra.mxu0 0.0
        %904 = vmatprep.subr.mxu0 0.0
        %905 = vmatpush1.msra.mxu0 0.0
        %906 = vmatprep.subr.mxu0 0.0
        %907 = vmatpush1.msra.mxu0 0.0
        %908 = vmatprep.subr.mxu0 0.0
        %909 = vmatpush1.msra.mxu0 0.0
        %910 = vmatprep.subr.mxu0 0.0
        %911 = vmatpush1.msra.mxu0 0.0
        %912 = vmatprep.subr.mxu0 0.0
        %913 = vmatpush1.msra.mxu0 0.0
        %914 = vmatprep.subr.mxu0 0.0
        %915 = vmatpush1.msra.mxu0 0.0
        %916 = vmatprep.subr.mxu0 0.0
        %917 = vmatpush1.msra.mxu0 0.0
        %918 = vmatprep.mubr.f32.mxu0 0.0
        %v919 = vand.u32 %v513, 4294901760
        %920 = vmatmul.mubr.f32.gmra.mrb[0].mxu0 %v919
        %v921 = vpop.f32.mrb[0].mxu0
        %v922 = vadd.f32 %v839, %v921
        %v923 = vpop.f32.mrb[0].mxu0
        %924 = vdwg.mxu0
        %925 = vmatprep.subr.mxu0 0.0
        %v926 = vand.u32 %v500, 4294901760
        %927 = vmatpush1.msra.mxu0 %v926
        %928 = vmatprep.subr.mxu0 0.0
        %v929 = vand.u32 %v501, 4294901760
        %930 = vmatpush1.msra.mxu0 %v929
        %931 = vmatprep.subr.mxu0 0.0
        %v932 = vand.u32 %v502, 4294901760
        %933 = vmatpush1.msra.mxu0 %v932
        %934 = vmatprep.subr.mxu0 0.0
        %v935 = vand.u32 %v503, 4294901760
        %936 = vmatpush1.msra.mxu0 %v935
        %937 = vmatprep.subr.mxu0 0.0
        %938 = vmatpush1.msra.mxu0 0.0
        %939 = vmatprep.subr.mxu0 0.0
        %940 = vmatpush1.msra.mxu0 0.0
        %941 = vmatprep.subr.mxu0 0.0
        %942 = vmatpush1.msra.mxu0 0.0
        %943 = vmatprep.subr.mxu0 0.0
        %944 = vmatpush1.msra.mxu0 0.0
        %945 = vmatprep.subr.mxu0 0.0
        %946 = vmatpush1.msra.mxu0 0.0
        %947 = vmatprep.subr.mxu0 0.0
        %948 = vmatpush1.msra.mxu0 0.0
        %949 = vmatprep.subr.mxu0 0.0
        %950 = vmatpush1.msra.mxu0 0.0
        %951 = vmatprep.subr.mxu0 0.0
        %952 = vmatpush1.msra.mxu0 0.0
        %953 = vmatprep.subr.mxu0 0.0
        %954 = vmatpush1.msra.mxu0 0.0
        %955 = vmatprep.subr.mxu0 0.0
        %956 = vmatpush1.msra.mxu0 0.0
        %957 = vmatprep.subr.mxu0 0.0
        %958 = vmatpush1.msra.mxu0 0.0
        %959 = vmatprep.subr.mxu0 0.0
        %960 = vmatpush1.msra.mxu0 0.0
        %961 = vmatprep.subr.mxu0 0.0
        %962 = vmatpush1.msra.mxu0 0.0
        %963 = vmatprep.subr.mxu0 0.0
        %964 = vmatpush1.msra.mxu0 0.0
        %965 = vmatprep.subr.mxu0 0.0
        %966 = vmatpush1.msra.mxu0 0.0
        %967 = vmatprep.subr.mxu0 0.0
        %968 = vmatpush1.msra.mxu0 0.0
        %969 = vmatprep.subr.mxu0 0.0
        %970 = vmatpush1.msra.mxu0 0.0
        %971 = vmatprep.subr.mxu0 0.0
        %972 = vmatpush1.msra.mxu0 0.0
        %973 = vmatprep.subr.mxu0 0.0
        %974 = vmatpush1.msra.mxu0 0.0
        %975 = vmatprep.subr.mxu0 0.0
        %976 = vmatpush1.msra.mxu0 0.0
        %977 = vmatprep.subr.mxu0 0.0
        %978 = vmatpush1.msra.mxu0 0.0
        %979 = vmatprep.subr.mxu0 0.0
        %980 = vmatpush1.msra.mxu0 0.0
        %981 = vmatprep.subr.mxu0 0.0
        %982 = vmatpush1.msra.mxu0 0.0
        %983 = vmatprep.subr.mxu0 0.0
        %984 = vmatpush1.msra.mxu0 0.0
        %985 = vmatprep.subr.mxu0 0.0
        %986 = vmatpush1.msra.mxu0 0.0
        %987 = vmatprep.subr.mxu0 0.0
        %988 = vmatpush1.msra.mxu0 0.0
        %989 = vmatprep.subr.mxu0 0.0
        %990 = vmatpush1.msra.mxu0 0.0
        %991 = vmatprep.subr.mxu0 0.0
        %992 = vmatpush1.msra.mxu0 0.0
        %993 = vmatprep.mubr.f32.mxu0 0.0
        %v994 = vand.u32 %v513, 4294901760
        %995 = vmatmul.mubr.f32.gmra.mrb[0].mxu0 %v994
        %v996 = vpop.f32.mrb[0].mxu0
        %v997 = vadd.f32 %v922, %v996
        %v998 = vpop.f32.mrb[0].mxu0
        %999 = vdwg.mxu0
        %v1000 = vmax.f32 %v997, 0.0
        %v1001 = vld [vmem:[#allocation9] sm:$0xff]
        %v1002 = vld [vmem:[#allocation9 + $0x8] sm:$0xff]
        %v1003 = vld [vmem:[#allocation9 + $0x10] sm:$0xff]
        %v1004 = vld [vmem:[#allocation9 + $0x18] sm:$0xff]
        %v1005 = vld [vmem:[%s5] sm:$0x1]
        %v1007 = vlaneseq
        %v1008 = vshrl.u32 %v1007, 7
        %v1009 = vsub.s32 0, %v1008
        %v1010 = vrot.slane %v1005, %v1009
        %v1013 = vsel %vm511, %v499, 0
        %1015 = vmatprep.subr.mxu0 0.0
        %v1016 = vand.u32 %v1001, 4294901760
        %1017 = vmatpush1.msra.mxu0 %v1016
        %1018 = vmatprep.subr.mxu0 0.0
        %v1019 = vand.u32 %v1002, 4294901760
        %1020 = vmatpush1.msra.mxu0 %v1019
        %1021 = vmatprep.subr.mxu0 0.0
        %v1022 = vand.u32 %v1003, 4294901760
        %1023 = vmatpush1.msra.mxu0 %v1022
        %1024 = vmatprep.subr.mxu0 0.0
        %v1025 = vand.u32 %v1004, 4294901760
        %1026 = vmatpush1.msra.mxu0 %v1025
        %1027 = vmatprep.subr.mxu0 0.0
        %1028 = vmatpush1.msra.mxu0 0.0
        %1029 = vmatprep.subr.mxu0 0.0
        %1030 = vmatpush1.msra.mxu0 0.0
        %1031 = vmatprep.subr.mxu0 0.0
        %1032 = vmatpush1.msra.mxu0 0.0
        %1033 = vmatprep.subr.mxu0 0.0
        %1034 = vmatpush1.msra.mxu0 0.0
        %1035 = vmatprep.subr.mxu0 0.0
        %1036 = vmatpush1.msra.mxu0 0.0
        %1037 = vmatprep.subr.mxu0 0.0
        %1038 = vmatpush1.msra.mxu0 0.0
        %1039 = vmatprep.subr.mxu0 0.0
        %1040 = vmatpush1.msra.mxu0 0.0
        %1041 = vmatprep.subr.mxu0 0.0
        %1042 = vmatpush1.msra.mxu0 0.0
        %1043 = vmatprep.subr.mxu0 0.0
        %1044 = vmatpush1.msra.mxu0 0.0
        %1045 = vmatprep.subr.mxu0 0.0
        %1046 = vmatpush1.msra.mxu0 0.0
        %1047 = vmatprep.subr.mxu0 0.0
        %1048 = vmatpush1.msra.mxu0 0.0
        %1049 = vmatprep.subr.mxu0 0.0
        %1050 = vmatpush1.msra.mxu0 0.0
        %1051 = vmatprep.subr.mxu0 0.0
        %1052 = vmatpush1.msra.mxu0 0.0
        %1053 = vmatprep.subr.mxu0 0.0
        %1054 = vmatpush1.msra.mxu0 0.0
        %1055 = vmatprep.subr.mxu0 0.0
        %1056 = vmatpush1.msra.mxu0 0.0
        %1057 = vmatprep.subr.mxu0 0.0
        %1058 = vmatpush1.msra.mxu0 0.0
        %1059 = vmatprep.subr.mxu0 0.0
        %1060 = vmatpush1.msra.mxu0 0.0
        %1061 = vmatprep.subr.mxu0 0.0
        %1062 = vmatpush1.msra.mxu0 0.0
        %1063 = vmatprep.subr.mxu0 0.0
        %1064 = vmatpush1.msra.mxu0 0.0
        %1065 = vmatprep.subr.mxu0 0.0
        %1066 = vmatpush1.msra.mxu0 0.0
        %1067 = vmatprep.subr.mxu0 0.0
        %1068 = vmatpush1.msra.mxu0 0.0
        %1069 = vmatprep.subr.mxu0 0.0
        %1070 = vmatpush1.msra.mxu0 0.0
        %1071 = vmatprep.subr.mxu0 0.0
        %1072 = vmatpush1.msra.mxu0 0.0
        %1073 = vmatprep.subr.mxu0 0.0
        %1074 = vmatpush1.msra.mxu0 0.0
        %1075 = vmatprep.subr.mxu0 0.0
        %1076 = vmatpush1.msra.mxu0 0.0
        %1077 = vmatprep.subr.mxu0 0.0
        %1078 = vmatpush1.msra.mxu0 0.0
        %1079 = vmatprep.subr.mxu0 0.0
        %1080 = vmatpush1.msra.mxu0 0.0
        %1081 = vmatprep.subr.mxu0 0.0
        %1082 = vmatpush1.msra.mxu0 0.0
        %1083 = vmatprep.mubr.f32.mxu0 0.0
        %v1084 = vand.u32 %v1013, 4294901760
        %v1085 = vsub.f32 %v1013, %v1084
        %v1086 = vand.u32 %v1085, 4294901760
        %v1087 = vsub.f32 %v1085, %v1086
        %v1088 = vand.u32 %v1087, 4294901760
        %1089 = vmatmul.mubr.f32.gmra.mrb[0].mxu0 %v1088
        %v1090 = vpop.f32.mrb[0].mxu0
        %v1091 = vadd.f32 %v1010, %v1090
        %v1092 = vpop.f32.mrb[0].mxu0
        %1093 = vdwg.mxu0
        %1094 = vmatprep.subr.mxu0 0.0
        %v1095 = vand.u32 %v1001, 4294901760
        %v1096 = vsub.f32 %v1001, %v1095
        %v1097 = vand.u32 %v1096, 4294901760
        %v1098 = vsub.f32 %v1096, %v1097
        %v1099 = vand.u32 %v1098, 4294901760
        %1100 = vmatpush1.msra.mxu0 %v1099
        %1101 = vmatprep.subr.mxu0 0.0
        %v1102 = vand.u32 %v1002, 4294901760
        %v1103 = vsub.f32 %v1002, %v1102
        %v1104 = vand.u32 %v1103, 4294901760
        %v1105 = vsub.f32 %v1103, %v1104
        %v1106 = vand.u32 %v1105, 4294901760
        %1107 = vmatpush1.msra.mxu0 %v1106
        %1108 = vmatprep.subr.mxu0 0.0
        %v1109 = vand.u32 %v1003, 4294901760
        %v1110 = vsub.f32 %v1003, %v1109
        %v1111 = vand.u32 %v1110, 4294901760
        %v1112 = vsub.f32 %v1110, %v1111
        %v1113 = vand.u32 %v1112, 4294901760
        %1114 = vmatpush1.msra.mxu0 %v1113
        %1115 = vmatprep.subr.mxu0 0.0
        %v1116 = vand.u32 %v1004, 4294901760
        %v1117 = vsub.f32 %v1004, %v1116
        %v1118 = vand.u32 %v1117, 4294901760
        %v1119 = vsub.f32 %v1117, %v1118
        %v1120 = vand.u32 %v1119, 4294901760
        %1121 = vmatpush1.msra.mxu0 %v1120
        %1122 = vmatprep.subr.mxu0 0.0
        %1123 = vmatpush1.msra.mxu0 0.0
        %1124 = vmatprep.subr.mxu0 0.0
        %1125 = vmatpush1.msra.mxu0 0.0
        %1126 = vmatprep.subr.mxu0 0.0
        %1127 = vmatpush1.msra.mxu0 0.0
        %1128 = vmatprep.subr.mxu0 0.0
        %1129 = vmatpush1.msra.mxu0 0.0
        %1130 = vmatprep.subr.mxu0 0.0
        %1131 = vmatpush1.msra.mxu0 0.0
        %1132 = vmatprep.subr.mxu0 0.0
        %1133 = vmatpush1.msra.mxu0 0.0
        %1134 = vmatprep.subr.mxu0 0.0
        %1135 = vmatpush1.msra.mxu0 0.0
        %1136 = vmatprep.subr.mxu0 0.0
        %1137 = vmatpush1.msra.mxu0 0.0
        %1138 = vmatprep.subr.mxu0 0.0
        %1139 = vmatpush1.msra.mxu0 0.0
        %1140 = vmatprep.subr.mxu0 0.0
        %1141 = vmatpush1.msra.mxu0 0.0
        %1142 = vmatprep.subr.mxu0 0.0
        %1143 = vmatpush1.msra.mxu0 0.0
        %1144 = vmatprep.subr.mxu0 0.0
        %1145 = vmatpush1.msra.mxu0 0.0
        %1146 = vmatprep.subr.mxu0 0.0
        %1147 = vmatpush1.msra.mxu0 0.0
        %1148 = vmatprep.subr.mxu0 0.0
        %1149 = vmatpush1.msra.mxu0 0.0
        %1150 = vmatprep.subr.mxu0 0.0
        %1151 = vmatpush1.msra.mxu0 0.0
        %1152 = vmatprep.subr.mxu0 0.0
        %1153 = vmatpush1.msra.mxu0 0.0
        %1154 = vmatprep.subr.mxu0 0.0
        %1155 = vmatpush1.msra.mxu0 0.0
        %1156 = vmatprep.subr.mxu0 0.0
        %1157 = vmatpush1.msra.mxu0 0.0
        %1158 = vmatprep.subr.mxu0 0.0
        %1159 = vmatpush1.msra.mxu0 0.0
        %1160 = vmatprep.subr.mxu0 0.0
        %1161 = vmatpush1.msra.mxu0 0.0
        %1162 = vmatprep.subr.mxu0 0.0
        %1163 = vmatpush1.msra.mxu0 0.0
        %1164 = vmatprep.subr.mxu0 0.0
        %1165 = vmatpush1.msra.mxu0 0.0
        %1166 = vmatprep.subr.mxu0 0.0
        %1167 = vmatpush1.msra.mxu0 0.0
        %1168 = vmatprep.subr.mxu0 0.0
        %1169 = vmatpush1.msra.mxu0 0.0
        %1170 = vmatprep.subr.mxu0 0.0
        %1171 = vmatpush1.msra.mxu0 0.0
        %1172 = vmatprep.subr.mxu0 0.0
        %1173 = vmatpush1.msra.mxu0 0.0
        %1174 = vmatprep.subr.mxu0 0.0
        %1175 = vmatpush1.msra.mxu0 0.0
        %1176 = vmatprep.subr.mxu0 0.0
        %1177 = vmatpush1.msra.mxu0 0.0
        %1178 = vmatprep.mubr.f32.mxu0 0.0
        %v1179 = vand.u32 %v1013, 4294901760
        %1180 = vmatmul.mubr.f32.gmra.mrb[0].mxu0 %v1179
        %v1181 = vpop.f32.mrb[0].mxu0
        %v1182 = vadd.f32 %v1091, %v1181
        %v1183 = vpop.f32.mrb[0].mxu0
        %1184 = vdwg.mxu0
        %1185 = vmatprep.subr.mxu0 0.0
        %v1186 = vand.u32 %v1001, 4294901760
        %v1187 = vsub.f32 %v1001, %v1186
        %1188 = vmatpush1.msra.mxu0 %v1187
        %1189 = vmatprep.subr.mxu0 0.0
        %v1190 = vand.u32 %v1002, 4294901760
        %v1191 = vsub.f32 %v1002, %v1190
        %1192 = vmatpush1.msra.mxu0 %v1191
        %1193 = vmatprep.subr.mxu0 0.0
        %v1194 = vand.u32 %v1003, 4294901760
        %v1195 = vsub.f32 %v1003, %v1194
        %1196 = vmatpush1.msra.mxu0 %v1195
        %1197 = vmatprep.subr.mxu0 0.0
        %v1198 = vand.u32 %v1004, 4294901760
        %v1199 = vsub.f32 %v1004, %v1198
        %1200 = vmatpush1.msra.mxu0 %v1199
        %1201 = vmatprep.subr.mxu0 0.0
        %1202 = vmatpush1.msra.mxu0 0.0
        %1203 = vmatprep.subr.mxu0 0.0
        %1204 = vmatpush1.msra.mxu0 0.0
        %1205 = vmatprep.subr.mxu0 0.0
        %1206 = vmatpush1.msra.mxu0 0.0
        %1207 = vmatprep.subr.mxu0 0.0
        %1208 = vmatpush1.msra.mxu0 0.0
        %1209 = vmatprep.subr.mxu0 0.0
        %1210 = vmatpush1.msra.mxu0 0.0
        %1211 = vmatprep.subr.mxu0 0.0
        %1212 = vmatpush1.msra.mxu0 0.0
        %1213 = vmatprep.subr.mxu0 0.0
        %1214 = vmatpush1.msra.mxu0 0.0
        %1215 = vmatprep.subr.mxu0 0.0
        %1216 = vmatpush1.msra.mxu0 0.0
        %1217 = vmatprep.subr.mxu0 0.0
        %1218 = vmatpush1.msra.mxu0 0.0
        %1219 = vmatprep.subr.mxu0 0.0
        %1220 = vmatpush1.msra.mxu0 0.0
        %1221 = vmatprep.subr.mxu0 0.0
        %1222 = vmatpush1.msra.mxu0 0.0
        %1223 = vmatprep.subr.mxu0 0.0
        %1224 = vmatpush1.msra.mxu0 0.0
        %1225 = vmatprep.subr.mxu0 0.0
        %1226 = vmatpush1.msra.mxu0 0.0
        %1227 = vmatprep.subr.mxu0 0.0
        %1228 = vmatpush1.msra.mxu0 0.0
        %1229 = vmatprep.subr.mxu0 0.0
        %1230 = vmatpush1.msra.mxu0 0.0
        %1231 = vmatprep.subr.mxu0 0.0
        %1232 = vmatpush1.msra.mxu0 0.0
        %1233 = vmatprep.subr.mxu0 0.0
        %1234 = vmatpush1.msra.mxu0 0.0
        %1235 = vmatprep.subr.mxu0 0.0
        %1236 = vmatpush1.msra.mxu0 0.0
        %1237 = vmatprep.subr.mxu0 0.0
        %1238 = vmatpush1.msra.mxu0 0.0
        %1239 = vmatprep.subr.mxu0 0.0
        %1240 = vmatpush1.msra.mxu0 0.0
        %1241 = vmatprep.subr.mxu0 0.0
        %1242 = vmatpush1.msra.mxu0 0.0
        %1243 = vmatprep.subr.mxu0 0.0
        %1244 = vmatpush1.msra.mxu0 0.0
        %1245 = vmatprep.subr.mxu0 0.0
        %1246 = vmatpush1.msra.mxu0 0.0
        %1247 = vmatprep.subr.mxu0 0.0
        %1248 = vmatpush1.msra.mxu0 0.0
        %1249 = vmatprep.subr.mxu0 0.0
        %1250 = vmatpush1.msra.mxu0 0.0
        %1251 = vmatprep.subr.mxu0 0.0
        %1252 = vmatpush1.msra.mxu0 0.0
        %1253 = vmatprep.subr.mxu0 0.0
        %1254 = vmatpush1.msra.mxu0 0.0
        %1255 = vmatprep.subr.mxu0 0.0
        %1256 = vmatpush1.msra.mxu0 0.0
        %1257 = vmatprep.mubr.f32.mxu0 0.0
        %v1258 = vand.u32 %v1013, 4294901760
        %v1259 = vsub.f32 %v1013, %v1258
        %1260 = vmatmul.mubr.f32.gmra.mrb[0].mxu0 %v1259
        %v1261 = vpop.f32.mrb[0].mxu0
        %v1262 = vadd.f32 %v1182, %v1261
        %v1263 = vpop.f32.mrb[0].mxu0
        %1264 = vdwg.mxu0
        %1265 = vmatprep.subr.mxu0 0.0
        %v1266 = vand.u32 %v1001, 4294901760
        %1267 = vmatpush1.msra.mxu0 %v1266
        %1268 = vmatprep.subr.mxu0 0.0
        %v1269 = vand.u32 %v1002, 4294901760
        %1270 = vmatpush1.msra.mxu0 %v1269
        %1271 = vmatprep.subr.mxu0 0.0
        %v1272 = vand.u32 %v1003, 4294901760
        %1273 = vmatpush1.msra.mxu0 %v1272
        %1274 = vmatprep.subr.mxu0 0.0
        %v1275 = vand.u32 %v1004, 4294901760
        %1276 = vmatpush1.msra.mxu0 %v1275
        %1277 = vmatprep.subr.mxu0 0.0
        %1278 = vmatpush1.msra.mxu0 0.0
        %1279 = vmatprep.subr.mxu0 0.0
        %1280 = vmatpush1.msra.mxu0 0.0
        %1281 = vmatprep.subr.mxu0 0.0
        %1282 = vmatpush1.msra.mxu0 0.0
        %1283 = vmatprep.subr.mxu0 0.0
        %1284 = vmatpush1.msra.mxu0 0.0
        %1285 = vmatprep.subr.mxu0 0.0
        %1286 = vmatpush1.msra.mxu0 0.0
        %1287 = vmatprep.subr.mxu0 0.0
        %1288 = vmatpush1.msra.mxu0 0.0
        %1289 = vmatprep.subr.mxu0 0.0
        %1290 = vmatpush1.msra.mxu0 0.0
        %1291 = vmatprep.subr.mxu0 0.0
        %1292 = vmatpush1.msra.mxu0 0.0
        %1293 = vmatprep.subr.mxu0 0.0
        %1294 = vmatpush1.msra.mxu0 0.0
        %1295 = vmatprep.subr.mxu0 0.0
        %1296 = vmatpush1.msra.mxu0 0.0
        %1297 = vmatprep.subr.mxu0 0.0
        %1298 = vmatpush1.msra.mxu0 0.0
        %1299 = vmatprep.subr.mxu0 0.0
        %1300 = vmatpush1.msra.mxu0 0.0
        %1301 = vmatprep.subr.mxu0 0.0
        %1302 = vmatpush1.msra.mxu0 0.0
        %1303 = vmatprep.subr.mxu0 0.0
        %1304 = vmatpush1.msra.mxu0 0.0
        %1305 = vmatprep.subr.mxu0 0.0
        %1306 = vmatpush1.msra.mxu0 0.0
        %1307 = vmatprep.subr.mxu0 0.0
        %1308 = vmatpush1.msra.mxu0 0.0
        %1309 = vmatprep.subr.mxu0 0.0
        %1310 = vmatpush1.msra.mxu0 0.0
        %1311 = vmatprep.subr.mxu0 0.0
        %1312 = vmatpush1.msra.mxu0 0.0
        %1313 = vmatprep.subr.mxu0 0.0
        %1314 = vmatpush1.msra.mxu0 0.0
        %1315 = vmatprep.subr.mxu0 0.0
        %1316 = vmatpush1.msra.mxu0 0.0
        %1317 = vmatprep.subr.mxu0 0.0
        %1318 = vmatpush1.msra.mxu0 0.0
        %1319 = vmatprep.subr.mxu0 0.0
        %1320 = vmatpush1.msra.mxu0 0.0
        %1321 = vmatprep.subr.mxu0 0.0
        %1322 = vmatpush1.msra.mxu0 0.0
        %1323 = vmatprep.subr.mxu0 0.0
        %1324 = vmatpush1.msra.mxu0 0.0
        %1325 = vmatprep.subr.mxu0 0.0
        %1326 = vmatpush1.msra.mxu0 0.0
        %1327 = vmatprep.subr.mxu0 0.0
        %1328 = vmatpush1.msra.mxu0 0.0
        %1329 = vmatprep.subr.mxu0 0.0
        %1330 = vmatpush1.msra.mxu0 0.0
        %1331 = vmatprep.subr.mxu0 0.0
        %1332 = vmatpush1.msra.mxu0 0.0
        %1333 = vmatprep.mubr.f32.mxu0 0.0
        %v1334 = vand.u32 %v1013, 4294901760
        %v1335 = vsub.f32 %v1013, %v1334
        %v1336 = vand.u32 %v1335, 4294901760
        %1337 = vmatmul.mubr.f32.gmra.mrb[0].mxu0 %v1336
        %v1338 = vpop.f32.mrb[0].mxu0
        %v1339 = vadd.f32 %v1262, %v1338
        %v1340 = vpop.f32.mrb[0].mxu0
        %1341 = vdwg.mxu0
        %1342 = vmatprep.subr.mxu0 0.0
        %v1343 = vand.u32 %v1001, 4294901760
        %v1344 = vsub.f32 %v1001, %v1343
        %v1345 = vand.u32 %v1344, 4294901760
        %1346 = vmatpush1.msra.mxu0 %v1345
        %1347 = vmatprep.subr.mxu0 0.0
        %v1348 = vand.u32 %v1002, 4294901760
        %v1349 = vsub.f32 %v1002, %v1348
        %v1350 = vand.u32 %v1349, 4294901760
        %1351 = vmatpush1.msra.mxu0 %v1350
        %1352 = vmatprep.subr.mxu0 0.0
        %v1353 = vand.u32 %v1003, 4294901760
        %v1354 = vsub.f32 %v1003, %v1353
        %v1355 = vand.u32 %v1354, 4294901760
        %1356 = vmatpush1.msra.mxu0 %v1355
        %1357 = vmatprep.subr.mxu0 0.0
        %v1358 = vand.u32 %v1004, 4294901760
        %v1359 = vsub.f32 %v1004, %v1358
        %v1360 = vand.u32 %v1359, 4294901760
        %1361 = vmatpush1.msra.mxu0 %v1360
        %1362 = vmatprep.subr.mxu0 0.0
        %1363 = vmatpush1.msra.mxu0 0.0
        %1364 = vmatprep.subr.mxu0 0.0
        %1365 = vmatpush1.msra.mxu0 0.0
        %1366 = vmatprep.subr.mxu0 0.0
        %1367 = vmatpush1.msra.mxu0 0.0
        %1368 = vmatprep.subr.mxu0 0.0
        %1369 = vmatpush1.msra.mxu0 0.0
        %1370 = vmatprep.subr.mxu0 0.0
        %1371 = vmatpush1.msra.mxu0 0.0
        %1372 = vmatprep.subr.mxu0 0.0
        %1373 = vmatpush1.msra.mxu0 0.0
        %1374 = vmatprep.subr.mxu0 0.0
        %1375 = vmatpush1.msra.mxu0 0.0
        %1376 = vmatprep.subr.mxu0 0.0
        %1377 = vmatpush1.msra.mxu0 0.0
        %1378 = vmatprep.subr.mxu0 0.0
        %1379 = vmatpush1.msra.mxu0 0.0
        %1380 = vmatprep.subr.mxu0 0.0
        %1381 = vmatpush1.msra.mxu0 0.0
        %1382 = vmatprep.subr.mxu0 0.0
        %1383 = vmatpush1.msra.mxu0 0.0
        %1384 = vmatprep.subr.mxu0 0.0
        %1385 = vmatpush1.msra.mxu0 0.0
        %1386 = vmatprep.subr.mxu0 0.0
        %1387 = vmatpush1.msra.mxu0 0.0
        %1388 = vmatprep.subr.mxu0 0.0
        %1389 = vmatpush1.msra.mxu0 0.0
        %1390 = vmatprep.subr.mxu0 0.0
        %1391 = vmatpush1.msra.mxu0 0.0
        %1392 = vmatprep.subr.mxu0 0.0
        %1393 = vmatpush1.msra.mxu0 0.0
        %1394 = vmatprep.subr.mxu0 0.0
        %1395 = vmatpush1.msra.mxu0 0.0
        %1396 = vmatprep.subr.mxu0 0.0
        %1397 = vmatpush1.msra.mxu0 0.0
        %1398 = vmatprep.subr.mxu0 0.0
        %1399 = vmatpush1.msra.mxu0 0.0
        %1400 = vmatprep.subr.mxu0 0.0
        %1401 = vmatpush1.msra.mxu0 0.0
        %1402 = vmatprep.subr.mxu0 0.0
        %1403 = vmatpush1.msra.mxu0 0.0
        %1404 = vmatprep.subr.mxu0 0.0
        %1405 = vmatpush1.msra.mxu0 0.0
        %1406 = vmatprep.subr.mxu0 0.0
        %1407 = vmatpush1.msra.mxu0 0.0
        %1408 = vmatprep.subr.mxu0 0.0
        %1409 = vmatpush1.msra.mxu0 0.0
        %1410 = vmatprep.subr.mxu0 0.0
        %1411 = vmatpush1.msra.mxu0 0.0
        %1412 = vmatprep.subr.mxu0 0.0
        %1413 = vmatpush1.msra.mxu0 0.0
        %1414 = vmatprep.subr.mxu0 0.0
        %1415 = vmatpush1.msra.mxu0 0.0
        %1416 = vmatprep.subr.mxu0 0.0
        %1417 = vmatpush1.msra.mxu0 0.0
        %1418 = vmatprep.mubr.f32.mxu0 0.0
        %v1419 = vand.u32 %v1013, 4294901760
        %1420 = vmatmul.mubr.f32.gmra.mrb[0].mxu0 %v1419
        %v1421 = vpop.f32.mrb[0].mxu0
        %v1422 = vadd.f32 %v1339, %v1421
        %v1423 = vpop.f32.mrb[0].mxu0
        %1424 = vdwg.mxu0
        %1425 = vmatprep.subr.mxu0 0.0
        %v1426 = vand.u32 %v1001, 4294901760
        %1427 = vmatpush1.msra.mxu0 %v1426
        %1428 = vmatprep.subr.mxu0 0.0
        %v1429 = vand.u32 %v1002, 4294901760
        %1430 = vmatpush1.msra.mxu0 %v1429
        %1431 = vmatprep.subr.mxu0 0.0
        %v1432 = vand.u32 %v1003, 4294901760
        %1433 = vmatpush1.msra.mxu0 %v1432
        %1434 = vmatprep.subr.mxu0 0.0
        %v1435 = vand.u32 %v1004, 4294901760
        %1436 = vmatpush1.msra.mxu0 %v1435
        %1437 = vmatprep.subr.mxu0 0.0
        %1438 = vmatpush1.msra.mxu0 0.0
        %1439 = vmatprep.subr.mxu0 0.0
        %1440 = vmatpush1.msra.mxu0 0.0
        %1441 = vmatprep.subr.mxu0 0.0
        %1442 = vmatpush1.msra.mxu0 0.0
        %1443 = vmatprep.subr.mxu0 0.0
        %1444 = vmatpush1.msra.mxu0 0.0
        %1445 = vmatprep.subr.mxu0 0.0
        %1446 = vmatpush1.msra.mxu0 0.0
        %1447 = vmatprep.subr.mxu0 0.0
        %1448 = vmatpush1.msra.mxu0 0.0
        %1449 = vmatprep.subr.mxu0 0.0
        %1450 = vmatpush1.msra.mxu0 0.0
        %1451 = vmatprep.subr.mxu0 0.0
        %1452 = vmatpush1.msra.mxu0 0.0
        %1453 = vmatprep.subr.mxu0 0.0
        %1454 = vmatpush1.msra.mxu0 0.0
        %1455 = vmatprep.subr.mxu0 0.0
        %1456 = vmatpush1.msra.mxu0 0.0
        %1457 = vmatprep.subr.mxu0 0.0
        %1458 = vmatpush1.msra.mxu0 0.0
        %1459 = vmatprep.subr.mxu0 0.0
        %1460 = vmatpush1.msra.mxu0 0.0
        %1461 = vmatprep.subr.mxu0 0.0
        %1462 = vmatpush1.msra.mxu0 0.0
        %1463 = vmatprep.subr.mxu0 0.0
        %1464 = vmatpush1.msra.mxu0 0.0
        %1465 = vmatprep.subr.mxu0 0.0
        %1466 = vmatpush1.msra.mxu0 0.0
        %1467 = vmatprep.subr.mxu0 0.0
        %1468 = vmatpush1.msra.mxu0 0.0
        %1469 = vmatprep.subr.mxu0 0.0
        %1470 = vmatpush1.msra.mxu0 0.0
        %1471 = vmatprep.subr.mxu0 0.0
        %1472 = vmatpush1.msra.mxu0 0.0
        %1473 = vmatprep.subr.mxu0 0.0
        %1474 = vmatpush1.msra.mxu0 0.0
        %1475 = vmatprep.subr.mxu0 0.0
        %1476 = vmatpush1.msra.mxu0 0.0
        %1477 = vmatprep.subr.mxu0 0.0
        %1478 = vmatpush1.msra.mxu0 0.0
        %1479 = vmatprep.subr.mxu0 0.0
        %1480 = vmatpush1.msra.mxu0 0.0
        %1481 = vmatprep.subr.mxu0 0.0
        %1482 = vmatpush1.msra.mxu0 0.0
        %1483 = vmatprep.subr.mxu0 0.0
        %1484 = vmatpush1.msra.mxu0 0.0
        %1485 = vmatprep.subr.mxu0 0.0
        %1486 = vmatpush1.msra.mxu0 0.0
        %1487 = vmatprep.subr.mxu0 0.0
        %1488 = vmatpush1.msra.mxu0 0.0
        %1489 = vmatprep.subr.mxu0 0.0
        %1490 = vmatpush1.msra.mxu0 0.0
        %1491 = vmatprep.subr.mxu0 0.0
        %1492 = vmatpush1.msra.mxu0 0.0
        %1493 = vmatprep.mubr.f32.mxu0 0.0
        %v1494 = vand.u32 %v1013, 4294901760
        %1495 = vmatmul.mubr.f32.gmra.mrb[0].mxu0 %v1494
        %v1496 = vpop.f32.mrb[0].mxu0
        %v1497 = vadd.f32 %v1422, %v1496
        %v1498 = vpop.f32.mrb[0].mxu0
        %1499 = vdwg.mxu0
        %v1500 = vmax.f32 %v1497, 0.0
        %v1501 = vmul.f32 %v1000, %v1000
        %v1502 = vsel %vm511, %v1501, 0.0
        %v1503 = vrot.slane %v1502, 4
        %v1504 = vadd.f32 %v1502, %v1503
        %v1505 = vrot.slane %v1504, 2
        %v1506 = vadd.f32 %v1504, %v1505
        %v1507 = vrot.slane %v1506, 1
        %v1508 = vadd.f32 %v1506, %v1507
        %v1509 = vmax.f32 %v1508, 1e-24
        %v1510 = vrsqrt.pop %v1509
        %v1511 = vmul.f32 %v1500, %v1500
        %v1512 = vsel %vm511, %v1511, 0.0
        %v1513 = vrot.slane %v1512, 4
        %v1514 = vadd.f32 %v1512, %v1513
        %v1515 = vrot.slane %v1514, 2
        %v1516 = vadd.f32 %v1514, %v1515
        %v1517 = vrot.slane %v1516, 1
        %v1518 = vadd.f32 %v1516, %v1517
        %v1519 = vmax.f32 %v1518, 1e-24
        %v1520 = vrsqrt.pop %v1519
        %v1521 = vmul.f32 %v1000, %v1510
        %v1522 = vmul.f32 %v1500, %v1520
        %v1523 = vld [vmem:[#allocation11] sm:$0xff]
        %v1524 = vld [vmem:[#allocation11 + $0x8] sm:$0xff]
        %v1525 = vld [vmem:[#allocation11 + $0x10] sm:$0xff]
        %v1526 = vld [vmem:[#allocation11 + $0x18] sm:$0xff]
        %v1527 = vld [vmem:[#allocation12] sm:$0xff]
        %v1528 = vld [vmem:[#allocation12 + $0x8] sm:$0xff]
        %v1529 = vld [vmem:[#allocation12 + $0x10] sm:$0xff]
        %v1530 = vld [vmem:[#allocation12 + $0x18] sm:$0xff]
        %v1532 = vsel %vm511, %v1522, 0
        %1534 = vmatprep.subr.mxu0 0.0
        %v1535 = vand.u32 %v1527, 4294901760
        %1536 = vmatpush1.msra.mxu0 %v1535
        %1537 = vmatprep.subr.mxu0 0.0
        %v1538 = vand.u32 %v1528, 4294901760
        %1539 = vmatpush1.msra.mxu0 %v1538
        %1540 = vmatprep.subr.mxu0 0.0
        %v1541 = vand.u32 %v1529, 4294901760
        %1542 = vmatpush1.msra.mxu0 %v1541
        %1543 = vmatprep.subr.mxu0 0.0
        %v1544 = vand.u32 %v1530, 4294901760
        %1545 = vmatpush1.msra.mxu0 %v1544
        %1546 = vmatprep.subr.mxu0 0.0
        %1547 = vmatpush1.msra.mxu0 0.0
        %1548 = vmatprep.subr.mxu0 0.0
        %1549 = vmatpush1.msra.mxu0 0.0
        %1550 = vmatprep.subr.mxu0 0.0
        %1551 = vmatpush1.msra.mxu0 0.0
        %1552 = vmatprep.subr.mxu0 0.0
        %1553 = vmatpush1.msra.mxu0 0.0
        %1554 = vmatprep.subr.mxu0 0.0
        %1555 = vmatpush1.msra.mxu0 0.0
        %1556 = vmatprep.subr.mxu0 0.0
        %1557 = vmatpush1.msra.mxu0 0.0
        %1558 = vmatprep.subr.mxu0 0.0
        %1559 = vmatpush1.msra.mxu0 0.0
        %1560 = vmatprep.subr.mxu0 0.0
        %1561 = vmatpush1.msra.mxu0 0.0
        %1562 = vmatprep.subr.mxu0 0.0
        %1563 = vmatpush1.msra.mxu0 0.0
        %1564 = vmatprep.subr.mxu0 0.0
        %1565 = vmatpush1.msra.mxu0 0.0
        %1566 = vmatprep.subr.mxu0 0.0
        %1567 = vmatpush1.msra.mxu0 0.0
        %1568 = vmatprep.subr.mxu0 0.0
        %1569 = vmatpush1.msra.mxu0 0.0
        %1570 = vmatprep.subr.mxu0 0.0
        %1571 = vmatpush1.msra.mxu0 0.0
        %1572 = vmatprep.subr.mxu0 0.0
        %1573 = vmatpush1.msra.mxu0 0.0
        %1574 = vmatprep.subr.mxu0 0.0
        %1575 = vmatpush1.msra.mxu0 0.0
        %1576 = vmatprep.subr.mxu0 0.0
        %1577 = vmatpush1.msra.mxu0 0.0
        %1578 = vmatprep.subr.mxu0 0.0
        %1579 = vmatpush1.msra.mxu0 0.0
        %1580 = vmatprep.subr.mxu0 0.0
        %1581 = vmatpush1.msra.mxu0 0.0
        %1582 = vmatprep.subr.mxu0 0.0
        %1583 = vmatpush1.msra.mxu0 0.0
        %1584 = vmatprep.subr.mxu0 0.0
        %1585 = vmatpush1.msra.mxu0 0.0
        %1586 = vmatprep.subr.mxu0 0.0
        %1587 = vmatpush1.msra.mxu0 0.0
        %1588 = vmatprep.subr.mxu0 0.0
        %1589 = vmatpush1.msra.mxu0 0.0
        %1590 = vmatprep.subr.mxu0 0.0
        %1591 = vmatpush1.msra.mxu0 0.0
        %1592 = vmatprep.subr.mxu0 0.0
        %1593 = vmatpush1.msra.mxu0 0.0
        %1594 = vmatprep.subr.mxu0 0.0
        %1595 = vmatpush1.msra.mxu0 0.0
        %1596 = vmatprep.subr.mxu0 0.0
        %1597 = vmatpush1.msra.mxu0 0.0
        %1598 = vmatprep.subr.mxu0 0.0
        %1599 = vmatpush1.msra.mxu0 0.0
        %1600 = vmatprep.subr.mxu0 0.0
        %1601 = vmatpush1.msra.mxu0 0.0
        %1602 = vmatprep.mubr.f32.mxu0 0.0
        %v1603 = vand.u32 %v1532, 4294901760
        %v1604 = vsub.f32 %v1532, %v1603
        %v1605 = vand.u32 %v1604, 4294901760
        %v1606 = vsub.f32 %v1604, %v1605
        %v1607 = vand.u32 %v1606, 4294901760
        %1608 = vmatmul.mubr.f32.gmra.mrb[0].mxu0 %v1607
        %v1609 = vpop.f32.mrb[0].mxu0
        %v1610 = vadd.f32 0.0, %v1609
        %v1611 = vpop.f32.mrb[0].mxu0
        %1612 = vdwg.mxu0
        %1613 = vmatprep.subr.mxu0 0.0
        %v1614 = vand.u32 %v1527, 4294901760
        %v1615 = vsub.f32 %v1527, %v1614
        %v1616 = vand.u32 %v1615, 4294901760
        %v1617 = vsub.f32 %v1615, %v1616
        %v1618 = vand.u32 %v1617, 4294901760
        %1619 = vmatpush1.msra.mxu0 %v1618
        %1620 = vmatprep.subr.mxu0 0.0
        %v1621 = vand.u32 %v1528, 4294901760
        %v1622 = vsub.f32 %v1528, %v1621
        %v1623 = vand.u32 %v1622, 4294901760
        %v1624 = vsub.f32 %v1622, %v1623
        %v1625 = vand.u32 %v1624, 4294901760
        %1626 = vmatpush1.msra.mxu0 %v1625
        %1627 = vmatprep.subr.mxu0 0.0
        %v1628 = vand.u32 %v1529, 4294901760
        %v1629 = vsub.f32 %v1529, %v1628
        %v1630 = vand.u32 %v1629, 4294901760
        %v1631 = vsub.f32 %v1629, %v1630
        %v1632 = vand.u32 %v1631, 4294901760
        %1633 = vmatpush1.msra.mxu0 %v1632
        %1634 = vmatprep.subr.mxu0 0.0
        %v1635 = vand.u32 %v1530, 4294901760
        %v1636 = vsub.f32 %v1530, %v1635
        %v1637 = vand.u32 %v1636, 4294901760
        %v1638 = vsub.f32 %v1636, %v1637
        %v1639 = vand.u32 %v1638, 4294901760
        %1640 = vmatpush1.msra.mxu0 %v1639
        %1641 = vmatprep.subr.mxu0 0.0
        %1642 = vmatpush1.msra.mxu0 0.0
        %1643 = vmatprep.subr.mxu0 0.0
        %1644 = vmatpush1.msra.mxu0 0.0
        %1645 = vmatprep.subr.mxu0 0.0
        %1646 = vmatpush1.msra.mxu0 0.0
        %1647 = vmatprep.subr.mxu0 0.0
        %1648 = vmatpush1.msra.mxu0 0.0
        %1649 = vmatprep.subr.mxu0 0.0
        %1650 = vmatpush1.msra.mxu0 0.0
        %1651 = vmatprep.subr.mxu0 0.0
        %1652 = vmatpush1.msra.mxu0 0.0
        %1653 = vmatprep.subr.mxu0 0.0
        %1654 = vmatpush1.msra.mxu0 0.0
        %1655 = vmatprep.subr.mxu0 0.0
        %1656 = vmatpush1.msra.mxu0 0.0
        %1657 = vmatprep.subr.mxu0 0.0
        %1658 = vmatpush1.msra.mxu0 0.0
        %1659 = vmatprep.subr.mxu0 0.0
        %1660 = vmatpush1.msra.mxu0 0.0
        %1661 = vmatprep.subr.mxu0 0.0
        %1662 = vmatpush1.msra.mxu0 0.0
        %1663 = vmatprep.subr.mxu0 0.0
        %1664 = vmatpush1.msra.mxu0 0.0
        %1665 = vmatprep.subr.mxu0 0.0
        %1666 = vmatpush1.msra.mxu0 0.0
        %1667 = vmatprep.subr.mxu0 0.0
        %1668 = vmatpush1.msra.mxu0 0.0
        %1669 = vmatprep.subr.mxu0 0.0
        %1670 = vmatpush1.msra.mxu0 0.0
        %1671 = vmatprep.subr.mxu0 0.0
        %1672 = vmatpush1.msra.mxu0 0.0
        %1673 = vmatprep.subr.mxu0 0.0
        %1674 = vmatpush1.msra.mxu0 0.0
        %1675 = vmatprep.subr.mxu0 0.0
        %1676 = vmatpush1.msra.mxu0 0.0
        %1677 = vmatprep.subr.mxu0 0.0
        %1678 = vmatpush1.msra.mxu0 0.0
        %1679 = vmatprep.subr.mxu0 0.0
        %1680 = vmatpush1.msra.mxu0 0.0
        %1681 = vmatprep.subr.mxu0 0.0
        %1682 = vmatpush1.msra.mxu0 0.0
        %1683 = vmatprep.subr.mxu0 0.0
        %1684 = vmatpush1.msra.mxu0 0.0
        %1685 = vmatprep.subr.mxu0 0.0
        %1686 = vmatpush1.msra.mxu0 0.0
        %1687 = vmatprep.subr.mxu0 0.0
        %1688 = vmatpush1.msra.mxu0 0.0
        %1689 = vmatprep.subr.mxu0 0.0
        %1690 = vmatpush1.msra.mxu0 0.0
        %1691 = vmatprep.subr.mxu0 0.0
        %1692 = vmatpush1.msra.mxu0 0.0
        %1693 = vmatprep.subr.mxu0 0.0
        %1694 = vmatpush1.msra.mxu0 0.0
        %1695 = vmatprep.subr.mxu0 0.0
        %1696 = vmatpush1.msra.mxu0 0.0
        %1697 = vmatprep.mubr.f32.mxu0 0.0
        %v1698 = vand.u32 %v1532, 4294901760
        %1699 = vmatmul.mubr.f32.gmra.mrb[0].mxu0 %v1698
        %v1700 = vpop.f32.mrb[0].mxu0
        %v1701 = vadd.f32 %v1610, %v1700
        %v1702 = vpop.f32.mrb[0].mxu0
        %1703 = vdwg.mxu0
        %1704 = vmatprep.subr.mxu0 0.0
        %v1705 = vand.u32 %v1527, 4294901760
        %v1706 = vsub.f32 %v1527, %v1705
        %1707 = vmatpush1.msra.mxu0 %v1706
        %1708 = vmatprep.subr.mxu0 0.0
        %v1709 = vand.u32 %v1528, 4294901760
        %v1710 = vsub.f32 %v1528, %v1709
        %1711 = vmatpush1.msra.mxu0 %v1710
        %1712 = vmatprep.subr.mxu0 0.0
        %v1713 = vand.u32 %v1529, 4294901760
        %v1714 = vsub.f32 %v1529, %v1713
        %1715 = vmatpush1.msra.mxu0 %v1714
        %1716 = vmatprep.subr.mxu0 0.0
        %v1717 = vand.u32 %v1530, 4294901760
        %v1718 = vsub.f32 %v1530, %v1717
        %1719 = vmatpush1.msra.mxu0 %v1718
        %1720 = vmatprep.subr.mxu0 0.0
        %1721 = vmatpush1.msra.mxu0 0.0
        %1722 = vmatprep.subr.mxu0 0.0
        %1723 = vmatpush1.msra.mxu0 0.0
        %1724 = vmatprep.subr.mxu0 0.0
        %1725 = vmatpush1.msra.mxu0 0.0
        %1726 = vmatprep.subr.mxu0 0.0
        %1727 = vmatpush1.msra.mxu0 0.0
        %1728 = vmatprep.subr.mxu0 0.0
        %1729 = vmatpush1.msra.mxu0 0.0
        %1730 = vmatprep.subr.mxu0 0.0
        %1731 = vmatpush1.msra.mxu0 0.0
        %1732 = vmatprep.subr.mxu0 0.0
        %1733 = vmatpush1.msra.mxu0 0.0
        %1734 = vmatprep.subr.mxu0 0.0
        %1735 = vmatpush1.msra.mxu0 0.0
        %1736 = vmatprep.subr.mxu0 0.0
        %1737 = vmatpush1.msra.mxu0 0.0
        %1738 = vmatprep.subr.mxu0 0.0
        %1739 = vmatpush1.msra.mxu0 0.0
        %1740 = vmatprep.subr.mxu0 0.0
        %1741 = vmatpush1.msra.mxu0 0.0
        %1742 = vmatprep.subr.mxu0 0.0
        %1743 = vmatpush1.msra.mxu0 0.0
        %1744 = vmatprep.subr.mxu0 0.0
        %1745 = vmatpush1.msra.mxu0 0.0
        %1746 = vmatprep.subr.mxu0 0.0
        %1747 = vmatpush1.msra.mxu0 0.0
        %1748 = vmatprep.subr.mxu0 0.0
        %1749 = vmatpush1.msra.mxu0 0.0
        %1750 = vmatprep.subr.mxu0 0.0
        %1751 = vmatpush1.msra.mxu0 0.0
        %1752 = vmatprep.subr.mxu0 0.0
        %1753 = vmatpush1.msra.mxu0 0.0
        %1754 = vmatprep.subr.mxu0 0.0
        %1755 = vmatpush1.msra.mxu0 0.0
        %1756 = vmatprep.subr.mxu0 0.0
        %1757 = vmatpush1.msra.mxu0 0.0
        %1758 = vmatprep.subr.mxu0 0.0
        %1759 = vmatpush1.msra.mxu0 0.0
        %1760 = vmatprep.subr.mxu0 0.0
        %1761 = vmatpush1.msra.mxu0 0.0
        %1762 = vmatprep.subr.mxu0 0.0
        %1763 = vmatpush1.msra.mxu0 0.0
        %1764 = vmatprep.subr.mxu0 0.0
        %1765 = vmatpush1.msra.mxu0 0.0
        %1766 = vmatprep.subr.mxu0 0.0
        %1767 = vmatpush1.msra.mxu0 0.0
        %1768 = vmatprep.subr.mxu0 0.0
        %1769 = vmatpush1.msra.mxu0 0.0
        %1770 = vmatprep.subr.mxu0 0.0
        %1771 = vmatpush1.msra.mxu0 0.0
        %1772 = vmatprep.subr.mxu0 0.0
        %1773 = vmatpush1.msra.mxu0 0.0
        %1774 = vmatprep.subr.mxu0 0.0
        %1775 = vmatpush1.msra.mxu0 0.0
        %1776 = vmatprep.mubr.f32.mxu0 0.0
        %v1777 = vand.u32 %v1532, 4294901760
        %v1778 = vsub.f32 %v1532, %v1777
        %1779 = vmatmul.mubr.f32.gmra.mrb[0].mxu0 %v1778
        %v1780 = vpop.f32.mrb[0].mxu0
        %v1781 = vadd.f32 %v1701, %v1780
        %v1782 = vpop.f32.mrb[0].mxu0
        %1783 = vdwg.mxu0
        %1784 = vmatprep.subr.mxu0 0.0
        %v1785 = vand.u32 %v1527, 4294901760
        %1786 = vmatpush1.msra.mxu0 %v1785
        %1787 = vmatprep.subr.mxu0 0.0
        %v1788 = vand.u32 %v1528, 4294901760
        %1789 = vmatpush1.msra.mxu0 %v1788
        %1790 = vmatprep.subr.mxu0 0.0
        %v1791 = vand.u32 %v1529, 4294901760
        %1792 = vmatpush1.msra.mxu0 %v1791
        %1793 = vmatprep.subr.mxu0 0.0
        %v1794 = vand.u32 %v1530, 4294901760
        %1795 = vmatpush1.msra.mxu0 %v1794
        %1796 = vmatprep.subr.mxu0 0.0
        %1797 = vmatpush1.msra.mxu0 0.0
        %1798 = vmatprep.subr.mxu0 0.0
        %1799 = vmatpush1.msra.mxu0 0.0
        %1800 = vmatprep.subr.mxu0 0.0
        %1801 = vmatpush1.msra.mxu0 0.0
        %1802 = vmatprep.subr.mxu0 0.0
        %1803 = vmatpush1.msra.mxu0 0.0
        %1804 = vmatprep.subr.mxu0 0.0
        %1805 = vmatpush1.msra.mxu0 0.0
        %1806 = vmatprep.subr.mxu0 0.0
        %1807 = vmatpush1.msra.mxu0 0.0
        %1808 = vmatprep.subr.mxu0 0.0
        %1809 = vmatpush1.msra.mxu0 0.0
        %1810 = vmatprep.subr.mxu0 0.0
        %1811 = vmatpush1.msra.mxu0 0.0
        %1812 = vmatprep.subr.mxu0 0.0
        %1813 = vmatpush1.msra.mxu0 0.0
        %1814 = vmatprep.subr.mxu0 0.0
        %1815 = vmatpush1.msra.mxu0 0.0
        %1816 = vmatprep.subr.mxu0 0.0
        %1817 = vmatpush1.msra.mxu0 0.0
        %1818 = vmatprep.subr.mxu0 0.0
        %1819 = vmatpush1.msra.mxu0 0.0
        %1820 = vmatprep.subr.mxu0 0.0
        %1821 = vmatpush1.msra.mxu0 0.0
        %1822 = vmatprep.subr.mxu0 0.0
        %1823 = vmatpush1.msra.mxu0 0.0
        %1824 = vmatprep.subr.mxu0 0.0
        %1825 = vmatpush1.msra.mxu0 0.0
        %1826 = vmatprep.subr.mxu0 0.0
        %1827 = vmatpush1.msra.mxu0 0.0
        %1828 = vmatprep.subr.mxu0 0.0
        %1829 = vmatpush1.msra.mxu0 0.0
        %1830 = vmatprep.subr.mxu0 0.0
        %1831 = vmatpush1.msra.mxu0 0.0
        %1832 = vmatprep.subr.mxu0 0.0
        %1833 = vmatpush1.msra.mxu0 0.0
        %1834 = vmatprep.subr.mxu0 0.0
        %1835 = vmatpush1.msra.mxu0 0.0
        %1836 = vmatprep.subr.mxu0 0.0
        %1837 = vmatpush1.msra.mxu0 0.0
        %1838 = vmatprep.subr.mxu0 0.0
        %1839 = vmatpush1.msra.mxu0 0.0
        %1840 = vmatprep.subr.mxu0 0.0
        %1841 = vmatpush1.msra.mxu0 0.0
        %1842 = vmatprep.subr.mxu0 0.0
        %1843 = vmatpush1.msra.mxu0 0.0
        %1844 = vmatprep.subr.mxu0 0.0
        %1845 = vmatpush1.msra.mxu0 0.0
        %1846 = vmatprep.subr.mxu0 0.0
        %1847 = vmatpush1.msra.mxu0 0.0
        %1848 = vmatprep.subr.mxu0 0.0
        %1849 = vmatpush1.msra.mxu0 0.0
        %1850 = vmatprep.subr.mxu0 0.0
        %1851 = vmatpush1.msra.mxu0 0.0
        %1852 = vmatprep.mubr.f32.mxu0 0.0
        %v1853 = vand.u32 %v1532, 4294901760
        %v1854 = vsub.f32 %v1532, %v1853
        %v1855 = vand.u32 %v1854, 4294901760
        %1856 = vmatmul.mubr.f32.gmra.mrb[0].mxu0 %v1855
        %v1857 = vpop.f32.mrb[0].mxu0
        %v1858 = vadd.f32 %v1781, %v1857
        %v1859 = vpop.f32.mrb[0].mxu0
        %1860 = vdwg.mxu0
        %1861 = vmatprep.subr.mxu0 0.0
        %v1862 = vand.u32 %v1527, 4294901760
        %v1863 = vsub.f32 %v1527, %v1862
        %v1864 = vand.u32 %v1863, 4294901760
        %1865 = vmatpush1.msra.mxu0 %v1864
        %1866 = vmatprep.subr.mxu0 0.0
        %v1867 = vand.u32 %v1528, 4294901760
        %v1868 = vsub.f32 %v1528, %v1867
        %v1869 = vand.u32 %v1868, 4294901760
        %1870 = vmatpush1.msra.mxu0 %v1869
        %1871 = vmatprep.subr.mxu0 0.0
        %v1872 = vand.u32 %v1529, 4294901760
        %v1873 = vsub.f32 %v1529, %v1872
        %v1874 = vand.u32 %v1873, 4294901760
        %1875 = vmatpush1.msra.mxu0 %v1874
        %1876 = vmatprep.subr.mxu0 0.0
        %v1877 = vand.u32 %v1530, 4294901760
        %v1878 = vsub.f32 %v1530, %v1877
        %v1879 = vand.u32 %v1878, 4294901760
        %1880 = vmatpush1.msra.mxu0 %v1879
        %1881 = vmatprep.subr.mxu0 0.0
        %1882 = vmatpush1.msra.mxu0 0.0
        %1883 = vmatprep.subr.mxu0 0.0
        %1884 = vmatpush1.msra.mxu0 0.0
        %1885 = vmatprep.subr.mxu0 0.0
        %1886 = vmatpush1.msra.mxu0 0.0
        %1887 = vmatprep.subr.mxu0 0.0
        %1888 = vmatpush1.msra.mxu0 0.0
        %1889 = vmatprep.subr.mxu0 0.0
        %1890 = vmatpush1.msra.mxu0 0.0
        %1891 = vmatprep.subr.mxu0 0.0
        %1892 = vmatpush1.msra.mxu0 0.0
        %1893 = vmatprep.subr.mxu0 0.0
        %1894 = vmatpush1.msra.mxu0 0.0
        %1895 = vmatprep.subr.mxu0 0.0
        %1896 = vmatpush1.msra.mxu0 0.0
        %1897 = vmatprep.subr.mxu0 0.0
        %1898 = vmatpush1.msra.mxu0 0.0
        %1899 = vmatprep.subr.mxu0 0.0
        %1900 = vmatpush1.msra.mxu0 0.0
        %1901 = vmatprep.subr.mxu0 0.0
        %1902 = vmatpush1.msra.mxu0 0.0
        %1903 = vmatprep.subr.mxu0 0.0
        %1904 = vmatpush1.msra.mxu0 0.0
        %1905 = vmatprep.subr.mxu0 0.0
        %1906 = vmatpush1.msra.mxu0 0.0
        %1907 = vmatprep.subr.mxu0 0.0
        %1908 = vmatpush1.msra.mxu0 0.0
        %1909 = vmatprep.subr.mxu0 0.0
        %1910 = vmatpush1.msra.mxu0 0.0
        %1911 = vmatprep.subr.mxu0 0.0
        %1912 = vmatpush1.msra.mxu0 0.0
        %1913 = vmatprep.subr.mxu0 0.0
        %1914 = vmatpush1.msra.mxu0 0.0
        %1915 = vmatprep.subr.mxu0 0.0
        %1916 = vmatpush1.msra.mxu0 0.0
        %1917 = vmatprep.subr.mxu0 0.0
        %1918 = vmatpush1.msra.mxu0 0.0
        %1919 = vmatprep.subr.mxu0 0.0
        %1920 = vmatpush1.msra.mxu0 0.0
        %1921 = vmatprep.subr.mxu0 0.0
        %1922 = vmatpush1.msra.mxu0 0.0
        %1923 = vmatprep.subr.mxu0 0.0
        %1924 = vmatpush1.msra.mxu0 0.0
        %1925 = vmatprep.subr.mxu0 0.0
        %1926 = vmatpush1.msra.mxu0 0.0
        %1927 = vmatprep.subr.mxu0 0.0
        %1928 = vmatpush1.msra.mxu0 0.0
        %1929 = vmatprep.subr.mxu0 0.0
        %1930 = vmatpush1.msra.mxu0 0.0
        %1931 = vmatprep.subr.mxu0 0.0
        %1932 = vmatpush1.msra.mxu0 0.0
        %1933 = vmatprep.subr.mxu0 0.0
        %1934 = vmatpush1.msra.mxu0 0.0
        %1935 = vmatprep.subr.mxu0 0.0
        %1936 = vmatpush1.msra.mxu0 0.0
        %1937 = vmatprep.mubr.f32.mxu0 0.0
        %v1938 = vand.u32 %v1532, 4294901760
        %1939 = vmatmul.mubr.f32.gmra.mrb[0].mxu0 %v1938
        %v1940 = vpop.f32.mrb[0].mxu0
        %v1941 = vadd.f32 %v1858, %v1940
        %v1942 = vpop.f32.mrb[0].mxu0
        %1943 = vdwg.mxu0
        %1944 = vmatprep.subr.mxu0 0.0
        %v1945 = vand.u32 %v1527, 4294901760
        %1946 = vmatpush1.msra.mxu0 %v1945
        %1947 = vmatprep.subr.mxu0 0.0
        %v1948 = vand.u32 %v1528, 4294901760
        %1949 = vmatpush1.msra.mxu0 %v1948
        %1950 = vmatprep.subr.mxu0 0.0
        %v1951 = vand.u32 %v1529, 4294901760
        %1952 = vmatpush1.msra.mxu0 %v1951
        %1953 = vmatprep.subr.mxu0 0.0
        %v1954 = vand.u32 %v1530, 4294901760
        %1955 = vmatpush1.msra.mxu0 %v1954
        %1956 = vmatprep.subr.mxu0 0.0
        %1957 = vmatpush1.msra.mxu0 0.0
        %1958 = vmatprep.subr.mxu0 0.0
        %1959 = vmatpush1.msra.mxu0 0.0
        %1960 = vmatprep.subr.mxu0 0.0
        %1961 = vmatpush1.msra.mxu0 0.0
        %1962 = vmatprep.subr.mxu0 0.0
        %1963 = vmatpush1.msra.mxu0 0.0
        %1964 = vmatprep.subr.mxu0 0.0
        %1965 = vmatpush1.msra.mxu0 0.0
        %1966 = vmatprep.subr.mxu0 0.0
        %1967 = vmatpush1.msra.mxu0 0.0
        %1968 = vmatprep.subr.mxu0 0.0
        %1969 = vmatpush1.msra.mxu0 0.0
        %1970 = vmatprep.subr.mxu0 0.0
        %1971 = vmatpush1.msra.mxu0 0.0
        %1972 = vmatprep.subr.mxu0 0.0
        %1973 = vmatpush1.msra.mxu0 0.0
        %1974 = vmatprep.subr.mxu0 0.0
        %1975 = vmatpush1.msra.mxu0 0.0
        %1976 = vmatprep.subr.mxu0 0.0
        %1977 = vmatpush1.msra.mxu0 0.0
        %1978 = vmatprep.subr.mxu0 0.0
        %1979 = vmatpush1.msra.mxu0 0.0
        %1980 = vmatprep.subr.mxu0 0.0
        %1981 = vmatpush1.msra.mxu0 0.0
        %1982 = vmatprep.subr.mxu0 0.0
        %1983 = vmatpush1.msra.mxu0 0.0
        %1984 = vmatprep.subr.mxu0 0.0
        %1985 = vmatpush1.msra.mxu0 0.0
        %1986 = vmatprep.subr.mxu0 0.0
        %1987 = vmatpush1.msra.mxu0 0.0
        %1988 = vmatprep.subr.mxu0 0.0
        %1989 = vmatpush1.msra.mxu0 0.0
        %1990 = vmatprep.subr.mxu0 0.0
        %1991 = vmatpush1.msra.mxu0 0.0
        %1992 = vmatprep.subr.mxu0 0.0
        %1993 = vmatpush1.msra.mxu0 0.0
        %1994 = vmatprep.subr.mxu0 0.0
        %1995 = vmatpush1.msra.mxu0 0.0
        %1996 = vmatprep.subr.mxu0 0.0
        %1997 = vmatpush1.msra.mxu0 0.0
        %1998 = vmatprep.subr.mxu0 0.0
        %1999 = vmatpush1.msra.mxu0 0.0
        %2000 = vmatprep.subr.mxu0 0.0
        %2001 = vmatpush1.msra.mxu0 0.0
        %2002 = vmatprep.subr.mxu0 0.0
        %2003 = vmatpush1.msra.mxu0 0.0
        %2004 = vmatprep.subr.mxu0 0.0
        %2005 = vmatpush1.msra.mxu0 0.0
        %2006 = vmatprep.subr.mxu0 0.0
        %2007 = vmatpush1.msra.mxu0 0.0
        %2008 = vmatprep.subr.mxu0 0.0
        %2009 = vmatpush1.msra.mxu0 0.0
        %2010 = vmatprep.subr.mxu0 0.0
        %2011 = vmatpush1.msra.mxu0 0.0
        %2012 = vmatprep.mubr.f32.mxu0 0.0
        %v2013 = vand.u32 %v1532, 4294901760
        %2014 = vmatmul.mubr.f32.gmra.mrb[0].mxu0 %v2013
        %v2015 = vpop.f32.mrb[0].mxu0
        %v2016 = vadd.f32 %v1941, %v2015
        %v2017 = vpop.f32.mrb[0].mxu0
        %2018 = vdwg.mxu0
        %v2020 = vsel %vm511, %v1521, 0
        %2022 = vmatprep.subr.mxu0 0.0
        %v2023 = vand.u32 %v1523, 4294901760
        %2024 = vmatpush1.msra.mxu0 %v2023
        %2025 = vmatprep.subr.mxu0 0.0
        %v2026 = vand.u32 %v1524, 4294901760
        %2027 = vmatpush1.msra.mxu0 %v2026
        %2028 = vmatprep.subr.mxu0 0.0
        %v2029 = vand.u32 %v1525, 4294901760
        %2030 = vmatpush1.msra.mxu0 %v2029
        %2031 = vmatprep.subr.mxu0 0.0
        %v2032 = vand.u32 %v1526, 4294901760
        %2033 = vmatpush1.msra.mxu0 %v2032
        %2034 = vmatprep.subr.mxu0 0.0
        %2035 = vmatpush1.msra.mxu0 0.0
        %2036 = vmatprep.subr.mxu0 0.0
        %2037 = vmatpush1.msra.mxu0 0.0
        %2038 = vmatprep.subr.mxu0 0.0
        %2039 = vmatpush1.msra.mxu0 0.0
        %2040 = vmatprep.subr.mxu0 0.0
        %2041 = vmatpush1.msra.mxu0 0.0
        %2042 = vmatprep.subr.mxu0 0.0
        %2043 = vmatpush1.msra.mxu0 0.0
        %2044 = vmatprep.subr.mxu0 0.0
        %2045 = vmatpush1.msra.mxu0 0.0
        %2046 = vmatprep.subr.mxu0 0.0
        %2047 = vmatpush1.msra.mxu0 0.0
        %2048 = vmatprep.subr.mxu0 0.0
        %2049 = vmatpush1.msra.mxu0 0.0
        %2050 = vmatprep.subr.mxu0 0.0
        %2051 = vmatpush1.msra.mxu0 0.0
        %2052 = vmatprep.subr.mxu0 0.0
        %2053 = vmatpush1.msra.mxu0 0.0
        %2054 = vmatprep.subr.mxu0 0.0
        %2055 = vmatpush1.msra.mxu0 0.0
        %2056 = vmatprep.subr.mxu0 0.0
        %2057 = vmatpush1.msra.mxu0 0.0
        %2058 = vmatprep.subr.mxu0 0.0
        %2059 = vmatpush1.msra.mxu0 0.0
        %2060 = vmatprep.subr.mxu0 0.0
        %2061 = vmatpush1.msra.mxu0 0.0
        %2062 = vmatprep.subr.mxu0 0.0
        %2063 = vmatpush1.msra.mxu0 0.0
        %2064 = vmatprep.subr.mxu0 0.0
        %2065 = vmatpush1.msra.mxu0 0.0
        %2066 = vmatprep.subr.mxu0 0.0
        %2067 = vmatpush1.msra.mxu0 0.0
        %2068 = vmatprep.subr.mxu0 0.0
        %2069 = vmatpush1.msra.mxu0 0.0
        %2070 = vmatprep.subr.mxu0 0.0
        %2071 = vmatpush1.msra.mxu0 0.0
        %2072 = vmatprep.subr.mxu0 0.0
        %2073 = vmatpush1.msra.mxu0 0.0
        %2074 = vmatprep.subr.mxu0 0.0
        %2075 = vmatpush1.msra.mxu0 0.0
        %2076 = vmatprep.subr.mxu0 0.0
        %2077 = vmatpush1.msra.mxu0 0.0
        %2078 = vmatprep.subr.mxu0 0.0
        %2079 = vmatpush1.msra.mxu0 0.0
        %2080 = vmatprep.subr.mxu0 0.0
        %2081 = vmatpush1.msra.mxu0 0.0
        %2082 = vmatprep.subr.mxu0 0.0
        %2083 = vmatpush1.msra.mxu0 0.0
        %2084 = vmatprep.subr.mxu0 0.0
        %2085 = vmatpush1.msra.mxu0 0.0
        %2086 = vmatprep.subr.mxu0 0.0
        %2087 = vmatpush1.msra.mxu0 0.0
        %2088 = vmatprep.subr.mxu0 0.0
        %2089 = vmatpush1.msra.mxu0 0.0
        %2090 = vmatprep.mubr.f32.mxu0 0.0
        %v2091 = vand.u32 %v2020, 4294901760
        %v2092 = vsub.f32 %v2020, %v2091
        %v2093 = vand.u32 %v2092, 4294901760
        %v2094 = vsub.f32 %v2092, %v2093
        %v2095 = vand.u32 %v2094, 4294901760
        %2096 = vmatmul.mubr.f32.gmra.mrb[0].mxu0 %v2095
        %v2097 = vpop.f32.mrb[0].mxu0
        %v2098 = vadd.f32 %v2016, %v2097
        %v2099 = vpop.f32.mrb[0].mxu0
        %2100 = vdwg.mxu0
        %2101 = vmatprep.subr.mxu0 0.0
        %v2102 = vand.u32 %v1523, 4294901760
        %v2103 = vsub.f32 %v1523, %v2102
        %v2104 = vand.u32 %v2103, 4294901760
        %v2105 = vsub.f32 %v2103, %v2104
        %v2106 = vand.u32 %v2105, 4294901760
        %2107 = vmatpush1.msra.mxu0 %v2106
        %2108 = vmatprep.subr.mxu0 0.0
        %v2109 = vand.u32 %v1524, 4294901760
        %v2110 = vsub.f32 %v1524, %v2109
        %v2111 = vand.u32 %v2110, 4294901760
        %v2112 = vsub.f32 %v2110, %v2111
        %v2113 = vand.u32 %v2112, 4294901760
        %2114 = vmatpush1.msra.mxu0 %v2113
        %2115 = vmatprep.subr.mxu0 0.0
        %v2116 = vand.u32 %v1525, 4294901760
        %v2117 = vsub.f32 %v1525, %v2116
        %v2118 = vand.u32 %v2117, 4294901760
        %v2119 = vsub.f32 %v2117, %v2118
        %v2120 = vand.u32 %v2119, 4294901760
        %2121 = vmatpush1.msra.mxu0 %v2120
        %2122 = vmatprep.subr.mxu0 0.0
        %v2123 = vand.u32 %v1526, 4294901760
        %v2124 = vsub.f32 %v1526, %v2123
        %v2125 = vand.u32 %v2124, 4294901760
        %v2126 = vsub.f32 %v2124, %v2125
        %v2127 = vand.u32 %v2126, 4294901760
        %2128 = vmatpush1.msra.mxu0 %v2127
        %2129 = vmatprep.subr.mxu0 0.0
        %2130 = vmatpush1.msra.mxu0 0.0
        %2131 = vmatprep.subr.mxu0 0.0
        %2132 = vmatpush1.msra.mxu0 0.0
        %2133 = vmatprep.subr.mxu0 0.0
        %2134 = vmatpush1.msra.mxu0 0.0
        %2135 = vmatprep.subr.mxu0 0.0
        %2136 = vmatpush1.msra.mxu0 0.0
        %2137 = vmatprep.subr.mxu0 0.0
        %2138 = vmatpush1.msra.mxu0 0.0
        %2139 = vmatprep.subr.mxu0 0.0
        %2140 = vmatpush1.msra.mxu0 0.0
        %2141 = vmatprep.subr.mxu0 0.0
        %2142 = vmatpush1.msra.mxu0 0.0
        %2143 = vmatprep.subr.mxu0 0.0
        %2144 = vmatpush1.msra.mxu0 0.0
        %2145 = vmatprep.subr.mxu0 0.0
        %2146 = vmatpush1.msra.mxu0 0.0
        %2147 = vmatprep.subr.mxu0 0.0
        %2148 = vmatpush1.msra.mxu0 0.0
        %2149 = vmatprep.subr.mxu0 0.0
        %2150 = vmatpush1.msra.mxu0 0.0
        %2151 = vmatprep.subr.mxu0 0.0
        %2152 = vmatpush1.msra.mxu0 0.0
        %2153 = vmatprep.subr.mxu0 0.0
        %2154 = vmatpush1.msra.mxu0 0.0
        %2155 = vmatprep.subr.mxu0 0.0
        %2156 = vmatpush1.msra.mxu0 0.0
        %2157 = vmatprep.subr.mxu0 0.0
        %2158 = vmatpush1.msra.mxu0 0.0
        %2159 = vmatprep.subr.mxu0 0.0
        %2160 = vmatpush1.msra.mxu0 0.0
        %2161 = vmatprep.subr.mxu0 0.0
        %2162 = vmatpush1.msra.mxu0 0.0
        %2163 = vmatprep.subr.mxu0 0.0
        %2164 = vmatpush1.msra.mxu0 0.0
        %2165 = vmatprep.subr.mxu0 0.0
        %2166 = vmatpush1.msra.mxu0 0.0
        %2167 = vmatprep.subr.mxu0 0.0
        %2168 = vmatpush1.msra.mxu0 0.0
        %2169 = vmatprep.subr.mxu0 0.0
        %2170 = vmatpush1.msra.mxu0 0.0
        %2171 = vmatprep.subr.mxu0 0.0
        %2172 = vmatpush1.msra.mxu0 0.0
        %2173 = vmatprep.subr.mxu0 0.0
        %2174 = vmatpush1.msra.mxu0 0.0
        %2175 = vmatprep.subr.mxu0 0.0
        %2176 = vmatpush1.msra.mxu0 0.0
        %2177 = vmatprep.subr.mxu0 0.0
        %2178 = vmatpush1.msra.mxu0 0.0
        %2179 = vmatprep.subr.mxu0 0.0
        %2180 = vmatpush1.msra.mxu0 0.0
        %2181 = vmatprep.subr.mxu0 0.0
        %2182 = vmatpush1.msra.mxu0 0.0
        %2183 = vmatprep.subr.mxu0 0.0
        %2184 = vmatpush1.msra.mxu0 0.0
        %2185 = vmatprep.mubr.f32.mxu0 0.0
        %v2186 = vand.u32 %v2020, 4294901760
        %2187 = vmatmul.mubr.f32.gmra.mrb[0].mxu0 %v2186
        %v2188 = vpop.f32.mrb[0].mxu0
        %v2189 = vadd.f32 %v2098, %v2188
        %v2190 = vpop.f32.mrb[0].mxu0
        %2191 = vdwg.mxu0
        %2192 = vmatprep.subr.mxu0 0.0
        %v2193 = vand.u32 %v1523, 4294901760
        %v2194 = vsub.f32 %v1523, %v2193
        %2195 = vmatpush1.msra.mxu0 %v2194
        %2196 = vmatprep.subr.mxu0 0.0
        %v2197 = vand.u32 %v1524, 4294901760
        %v2198 = vsub.f32 %v1524, %v2197
        %2199 = vmatpush1.msra.mxu0 %v2198
        %2200 = vmatprep.subr.mxu0 0.0
        %v2201 = vand.u32 %v1525, 4294901760
        %v2202 = vsub.f32 %v1525, %v2201
        %2203 = vmatpush1.msra.mxu0 %v2202
        %2204 = vmatprep.subr.mxu0 0.0
        %v2205 = vand.u32 %v1526, 4294901760
        %v2206 = vsub.f32 %v1526, %v2205
        %2207 = vmatpush1.msra.mxu0 %v2206
        %2208 = vmatprep.subr.mxu0 0.0
        %2209 = vmatpush1.msra.mxu0 0.0
        %2210 = vmatprep.subr.mxu0 0.0
        %2211 = vmatpush1.msra.mxu0 0.0
        %2212 = vmatprep.subr.mxu0 0.0
        %2213 = vmatpush1.msra.mxu0 0.0
        %2214 = vmatprep.subr.mxu0 0.0
        %2215 = vmatpush1.msra.mxu0 0.0
        %2216 = vmatprep.subr.mxu0 0.0
        %2217 = vmatpush1.msra.mxu0 0.0
        %2218 = vmatprep.subr.mxu0 0.0
        %2219 = vmatpush1.msra.mxu0 0.0
        %2220 = vmatprep.subr.mxu0 0.0
        %2221 = vmatpush1.msra.mxu0 0.0
        %2222 = vmatprep.subr.mxu0 0.0
        %2223 = vmatpush1.msra.mxu0 0.0
        %2224 = vmatprep.subr.mxu0 0.0
        %2225 = vmatpush1.msra.mxu0 0.0
        %2226 = vmatprep.subr.mxu0 0.0
        %2227 = vmatpush1.msra.mxu0 0.0
        %2228 = vmatprep.subr.mxu0 0.0
        %2229 = vmatpush1.msra.mxu0 0.0
        %2230 = vmatprep.subr.mxu0 0.0
        %2231 = vmatpush1.msra.mxu0 0.0
        %2232 = vmatprep.subr.mxu0 0.0
        %2233 = vmatpush1.msra.mxu0 0.0
        %2234 = vmatprep.subr.mxu0 0.0
        %2235 = vmatpush1.msra.mxu0 0.0
        %2236 = vmatprep.subr.mxu0 0.0
        %2237 = vmatpush1.msra.mxu0 0.0
        %2238 = vmatprep.subr.mxu0 0.0
        %2239 = vmatpush1.msra.mxu0 0.0
        %2240 = vmatprep.subr.mxu0 0.0
        %2241 = vmatpush1.msra.mxu0 0.0
        %2242 = vmatprep.subr.mxu0 0.0
        %2243 = vmatpush1.msra.mxu0 0.0
        %2244 = vmatprep.subr.mxu0 0.0
        %2245 = vmatpush1.msra.mxu0 0.0
        %2246 = vmatprep.subr.mxu0 0.0
        %2247 = vmatpush1.msra.mxu0 0.0
        %2248 = vmatprep.subr.mxu0 0.0
        %2249 = vmatpush1.msra.mxu0 0.0
        %2250 = vmatprep.subr.mxu0 0.0
        %2251 = vmatpush1.msra.mxu0 0.0
        %2252 = vmatprep.subr.mxu0 0.0
        %2253 = vmatpush1.msra.mxu0 0.0
        %2254 = vmatprep.subr.mxu0 0.0
        %2255 = vmatpush1.msra.mxu0 0.0
        %2256 = vmatprep.subr.mxu0 0.0
        %2257 = vmatpush1.msra.mxu0 0.0
        %2258 = vmatprep.subr.mxu0 0.0
        %2259 = vmatpush1.msra.mxu0 0.0
        %2260 = vmatprep.subr.mxu0 0.0
        %2261 = vmatpush1.msra.mxu0 0.0
        %2262 = vmatprep.subr.mxu0 0.0
        %2263 = vmatpush1.msra.mxu0 0.0
        %2264 = vmatprep.mubr.f32.mxu0 0.0
        %v2265 = vand.u32 %v2020, 4294901760
        %v2266 = vsub.f32 %v2020, %v2265
        %2267 = vmatmul.mubr.f32.gmra.mrb[0].mxu0 %v2266
        %v2268 = vpop.f32.mrb[0].mxu0
        %v2269 = vadd.f32 %v2189, %v2268
        %v2270 = vpop.f32.mrb[0].mxu0
        %2271 = vdwg.mxu0
        %2272 = vmatprep.subr.mxu0 0.0
        %v2273 = vand.u32 %v1523, 4294901760
        %2274 = vmatpush1.msra.mxu0 %v2273
        %2275 = vmatprep.subr.mxu0 0.0
        %v2276 = vand.u32 %v1524, 4294901760
        %2277 = vmatpush1.msra.mxu0 %v2276
        %2278 = vmatprep.subr.mxu0 0.0
        %v2279 = vand.u32 %v1525, 4294901760
        %2280 = vmatpush1.msra.mxu0 %v2279
        %2281 = vmatprep.subr.mxu0 0.0
        %v2282 = vand.u32 %v1526, 4294901760
        %2283 = vmatpush1.msra.mxu0 %v2282
        %2284 = vmatprep.subr.mxu0 0.0
        %2285 = vmatpush1.msra.mxu0 0.0
        %2286 = vmatprep.subr.mxu0 0.0
        %2287 = vmatpush1.msra.mxu0 0.0
        %2288 = vmatprep.subr.mxu0 0.0
        %2289 = vmatpush1.msra.mxu0 0.0
        %2290 = vmatprep.subr.mxu0 0.0
        %2291 = vmatpush1.msra.mxu0 0.0
        %2292 = vmatprep.subr.mxu0 0.0
        %2293 = vmatpush1.msra.mxu0 0.0
        %2294 = vmatprep.subr.mxu0 0.0
        %2295 = vmatpush1.msra.mxu0 0.0
        %2296 = vmatprep.subr.mxu0 0.0
        %2297 = vmatpush1.msra.mxu0 0.0
        %2298 = vmatprep.subr.mxu0 0.0
        %2299 = vmatpush1.msra.mxu0 0.0
        %2300 = vmatprep.subr.mxu0 0.0
        %2301 = vmatpush1.msra.mxu0 0.0
        %2302 = vmatprep.subr.mxu0 0.0
        %2303 = vmatpush1.msra.mxu0 0.0
        %2304 = vmatprep.subr.mxu0 0.0
        %2305 = vmatpush1.msra.mxu0 0.0
        %2306 = vmatprep.subr.mxu0 0.0
        %2307 = vmatpush1.msra.mxu0 0.0
        %2308 = vmatprep.subr.mxu0 0.0
        %2309 = vmatpush1.msra.mxu0 0.0
        %2310 = vmatprep.subr.mxu0 0.0
        %2311 = vmatpush1.msra.mxu0 0.0
        %2312 = vmatprep.subr.mxu0 0.0
        %2313 = vmatpush1.msra.mxu0 0.0
        %2314 = vmatprep.subr.mxu0 0.0
        %2315 = vmatpush1.msra.mxu0 0.0
        %2316 = vmatprep.subr.mxu0 0.0
        %2317 = vmatpush1.msra.mxu0 0.0
        %2318 = vmatprep.subr.mxu0 0.0
        %2319 = vmatpush1.msra.mxu0 0.0
        %2320 = vmatprep.subr.mxu0 0.0
        %2321 = vmatpush1.msra.mxu0 0.0
        %2322 = vmatprep.subr.mxu0 0.0
        %2323 = vmatpush1.msra.mxu0 0.0
        %2324 = vmatprep.subr.mxu0 0.0
        %2325 = vmatpush1.msra.mxu0 0.0
        %2326 = vmatprep.subr.mxu0 0.0
        %2327 = vmatpush1.msra.mxu0 0.0
        %2328 = vmatprep.subr.mxu0 0.0
        %2329 = vmatpush1.msra.mxu0 0.0
        %2330 = vmatprep.subr.mxu0 0.0
        %2331 = vmatpush1.msra.mxu0 0.0
        %2332 = vmatprep.subr.mxu0 0.0
        %2333 = vmatpush1.msra.mxu0 0.0
        %2334 = vmatprep.subr.mxu0 0.0
        %2335 = vmatpush1.msra.mxu0 0.0
        %2336 = vmatprep.subr.mxu0 0.0
        %2337 = vmatpush1.msra.mxu0 0.0
        %2338 = vmatprep.subr.mxu0 0.0
        %2339 = vmatpush1.msra.mxu0 0.0
        %2340 = vmatprep.mubr.f32.mxu0 0.0
        %v2341 = vand.u32 %v2020, 4294901760
        %v2342 = vsub.f32 %v2020, %v2341
        %v2343 = vand.u32 %v2342, 4294901760
        %2344 = vmatmul.mubr.f32.gmra.mrb[0].mxu0 %v2343
        %v2345 = vpop.f32.mrb[0].mxu0
        %v2346 = vadd.f32 %v2269, %v2345
        %v2347 = vpop.f32.mrb[0].mxu0
        %2348 = vdwg.mxu0
        %2349 = vmatprep.subr.mxu0 0.0
        %v2350 = vand.u32 %v1523, 4294901760
        %v2351 = vsub.f32 %v1523, %v2350
        %v2352 = vand.u32 %v2351, 4294901760
        %2353 = vmatpush1.msra.mxu0 %v2352
        %2354 = vmatprep.subr.mxu0 0.0
        %v2355 = vand.u32 %v1524, 4294901760
        %v2356 = vsub.f32 %v1524, %v2355
        %v2357 = vand.u32 %v2356, 4294901760
        %2358 = vmatpush1.msra.mxu0 %v2357
        %2359 = vmatprep.subr.mxu0 0.0
        %v2360 = vand.u32 %v1525, 4294901760
        %v2361 = vsub.f32 %v1525, %v2360
        %v2362 = vand.u32 %v2361, 4294901760
        %2363 = vmatpush1.msra.mxu0 %v2362
        %2364 = vmatprep.subr.mxu0 0.0
        %v2365 = vand.u32 %v1526, 4294901760
        %v2366 = vsub.f32 %v1526, %v2365
        %v2367 = vand.u32 %v2366, 4294901760
        %2368 = vmatpush1.msra.mxu0 %v2367
        %2369 = vmatprep.subr.mxu0 0.0
        %2370 = vmatpush1.msra.mxu0 0.0
        %2371 = vmatprep.subr.mxu0 0.0
        %2372 = vmatpush1.msra.mxu0 0.0
        %2373 = vmatprep.subr.mxu0 0.0
        %2374 = vmatpush1.msra.mxu0 0.0
        %2375 = vmatprep.subr.mxu0 0.0
        %2376 = vmatpush1.msra.mxu0 0.0
        %2377 = vmatprep.subr.mxu0 0.0
        %2378 = vmatpush1.msra.mxu0 0.0
        %2379 = vmatprep.subr.mxu0 0.0
        %2380 = vmatpush1.msra.mxu0 0.0
        %2381 = vmatprep.subr.mxu0 0.0
        %2382 = vmatpush1.msra.mxu0 0.0
        %2383 = vmatprep.subr.mxu0 0.0
        %2384 = vmatpush1.msra.mxu0 0.0
        %2385 = vmatprep.subr.mxu0 0.0
        %2386 = vmatpush1.msra.mxu0 0.0
        %2387 = vmatprep.subr.mxu0 0.0
        %2388 = vmatpush1.msra.mxu0 0.0
        %2389 = vmatprep.subr.mxu0 0.0
        %2390 = vmatpush1.msra.mxu0 0.0
        %2391 = vmatprep.subr.mxu0 0.0
        %2392 = vmatpush1.msra.mxu0 0.0
        %2393 = vmatprep.subr.mxu0 0.0
        %2394 = vmatpush1.msra.mxu0 0.0
        %2395 = vmatprep.subr.mxu0 0.0
        %2396 = vmatpush1.msra.mxu0 0.0
        %2397 = vmatprep.subr.mxu0 0.0
        %2398 = vmatpush1.msra.mxu0 0.0
        %2399 = vmatprep.subr.mxu0 0.0
        %2400 = vmatpush1.msra.mxu0 0.0
        %2401 = vmatprep.subr.mxu0 0.0
        %2402 = vmatpush1.msra.mxu0 0.0
        %2403 = vmatprep.subr.mxu0 0.0
        %2404 = vmatpush1.msra.mxu0 0.0
        %2405 = vmatprep.subr.mxu0 0.0
        %2406 = vmatpush1.msra.mxu0 0.0
        %2407 = vmatprep.subr.mxu0 0.0
        %2408 = vmatpush1.msra.mxu0 0.0
        %2409 = vmatprep.subr.mxu0 0.0
        %2410 = vmatpush1.msra.mxu0 0.0
        %2411 = vmatprep.subr.mxu0 0.0
        %2412 = vmatpush1.msra.mxu0 0.0
        %2413 = vmatprep.subr.mxu0 0.0
        %2414 = vmatpush1.msra.mxu0 0.0
        %2415 = vmatprep.subr.mxu0 0.0
        %2416 = vmatpush1.msra.mxu0 0.0
        %2417 = vmatprep.subr.mxu0 0.0
        %2418 = vmatpush1.msra.mxu0 0.0
        %2419 = vmatprep.subr.mxu0 0.0
        %2420 = vmatpush1.msra.mxu0 0.0
        %2421 = vmatprep.subr.mxu0 0.0
        %2422 = vmatpush1.msra.mxu0 0.0
        %2423 = vmatprep.subr.mxu0 0.0
        %2424 = vmatpush1.msra.mxu0 0.0
        %2425 = vmatprep.mubr.f32.mxu0 0.0
        %v2426 = vand.u32 %v2020, 4294901760
        %2427 = vmatmul.mubr.f32.gmra.mrb[0].mxu0 %v2426
        %v2428 = vpop.f32.mrb[0].mxu0
        %v2429 = vadd.f32 %v2346, %v2428
        %v2430 = vpop.f32.mrb[0].mxu0
        %2431 = vdwg.mxu0
        %2432 = vmatprep.subr.mxu0 0.0
        %v2433 = vand.u32 %v1523, 4294901760
        %2434 = vmatpush1.msra.mxu0 %v2433
        %2435 = vmatprep.subr.mxu0 0.0
        %v2436 = vand.u32 %v1524, 4294901760
        %2437 = vmatpush1.msra.mxu0 %v2436
        %2438 = vmatprep.subr.mxu0 0.0
        %v2439 = vand.u32 %v1525, 4294901760
        %2440 = vmatpush1.msra.mxu0 %v2439
        %2441 = vmatprep.subr.mxu0 0.0
        %v2442 = vand.u32 %v1526, 4294901760
        %2443 = vmatpush1.msra.mxu0 %v2442
        %2444 = vmatprep.subr.mxu0 0.0
        %2445 = vmatpush1.msra.mxu0 0.0
        %2446 = vmatprep.subr.mxu0 0.0
        %2447 = vmatpush1.msra.mxu0 0.0
        %2448 = vmatprep.subr.mxu0 0.0
        %2449 = vmatpush1.msra.mxu0 0.0
        %2450 = vmatprep.subr.mxu0 0.0
        %2451 = vmatpush1.msra.mxu0 0.0
        %2452 = vmatprep.subr.mxu0 0.0
        %2453 = vmatpush1.msra.mxu0 0.0
        %2454 = vmatprep.subr.mxu0 0.0
        %2455 = vmatpush1.msra.mxu0 0.0
        %2456 = vmatprep.subr.mxu0 0.0
        %2457 = vmatpush1.msra.mxu0 0.0
        %2458 = vmatprep.subr.mxu0 0.0
        %2459 = vmatpush1.msra.mxu0 0.0
        %2460 = vmatprep.subr.mxu0 0.0
        %2461 = vmatpush1.msra.mxu0 0.0
        %2462 = vmatprep.subr.mxu0 0.0
        %2463 = vmatpush1.msra.mxu0 0.0
        %2464 = vmatprep.subr.mxu0 0.0
        %2465 = vmatpush1.msra.mxu0 0.0
        %2466 = vmatprep.subr.mxu0 0.0
        %2467 = vmatpush1.msra.mxu0 0.0
        %2468 = vmatprep.subr.mxu0 0.0
        %2469 = vmatpush1.msra.mxu0 0.0
        %2470 = vmatprep.subr.mxu0 0.0
        %2471 = vmatpush1.msra.mxu0 0.0
        %2472 = vmatprep.subr.mxu0 0.0
        %2473 = vmatpush1.msra.mxu0 0.0
        %2474 = vmatprep.subr.mxu0 0.0
        %2475 = vmatpush1.msra.mxu0 0.0
        %2476 = vmatprep.subr.mxu0 0.0
        %2477 = vmatpush1.msra.mxu0 0.0
        %2478 = vmatprep.subr.mxu0 0.0
        %2479 = vmatpush1.msra.mxu0 0.0
        %2480 = vmatprep.subr.mxu0 0.0
        %2481 = vmatpush1.msra.mxu0 0.0
        %2482 = vmatprep.subr.mxu0 0.0
        %2483 = vmatpush1.msra.mxu0 0.0
        %2484 = vmatprep.subr.mxu0 0.0
        %2485 = vmatpush1.msra.mxu0 0.0
        %2486 = vmatprep.subr.mxu0 0.0
        %2487 = vmatpush1.msra.mxu0 0.0
        %2488 = vmatprep.subr.mxu0 0.0
        %2489 = vmatpush1.msra.mxu0 0.0
        %2490 = vmatprep.subr.mxu0 0.0
        %2491 = vmatpush1.msra.mxu0 0.0
        %2492 = vmatprep.subr.mxu0 0.0
        %2493 = vmatpush1.msra.mxu0 0.0
        %2494 = vmatprep.subr.mxu0 0.0
        %2495 = vmatpush1.msra.mxu0 0.0
        %2496 = vmatprep.subr.mxu0 0.0
        %2497 = vmatpush1.msra.mxu0 0.0
        %2498 = vmatprep.subr.mxu0 0.0
        %2499 = vmatpush1.msra.mxu0 0.0
        %2500 = vmatprep.mubr.f32.mxu0 0.0
        %v2501 = vand.u32 %v2020, 4294901760
        %2502 = vmatmul.mubr.f32.gmra.mrb[0].mxu0 %v2501
        %v2503 = vpop.f32.mrb[0].mxu0
        %v2504 = vadd.f32 %v2429, %v2503
        %v2505 = vpop.f32.mrb[0].mxu0
        %2506 = vdwg.mxu0
        %v2507 = vld [vmem:[%s8] sm:$0x1]
        %v2509 = vlaneseq
        %v2510 = vshrl.u32 %v2509, 7
        %v2511 = vsub.s32 0, %v2510
        %v2512 = vrot.slane %v2507, %v2511
        %v2514 = vadd.f32 %v2504, %v2512
        %v2515 = vmax.f32 %v2514, 0.0
        %v2516 = vld [vmem:[%s9] sm:$0x1]
        %v2518 = vlaneseq
        %v2519 = vshrl.u32 %v2518, 7
        %v2520 = vsub.s32 0, %v2519
        %v2521 = vrot.slane %v2516, %v2520
        %v2523 = vmul.f32 %v2515, %v2521
        %vm2524 = vcmask 523264
        %v2525 = vsel %vm2524, %v2523, 0.0
        %2526 = vadd.xlane.f32.xlu0 %v2525
        %v2527 = vpop.xlane.xlu0 %2526
        %v2528 = vld [vmem:[#allocation2] sm:$0x1]
        %2530 = vset.pattern.permute.xlu0 0
        %2531 = vperm.xlu0 %2530, %v2528
        %v2532 = vpop.permute.xlu0 %2531
        %v2534 = vlaneseq
        %v2535 = vshrl.u32 %v2534, 7
        %v2536 = vsub.s32 0, %v2535
        %v2537 = vrot.slane %v2532, %v2536
        %v2538 = vadd.f32 %v2527, %v2537
        %v2539 = vxor.u32 %v2538, 2147483648
        %v2540 = vmul.f32 %v2539, 1.442695
        %v2541 = vpow.pop %v2540
        %v2542 = vadd.f32 %v2541, 1.0
        %v2543 = vrcp.pop %v2542
        %v2544 = vmul.f32 1.0, %v2543
        %v2546 = vlaneseq
        %v2547 = vand.u32 %v2546, 127
        %v2548 = vlaneseq
        %v2549 = vshrl.u32 %v2548, 7
        %v2550 = vsub.s32 %v2547, %v2549
        %v2551 = vrot.slane %v2544, %v2550
        %vm2553 = vcmask 57344
        %2554 = vst.msk [vmem:[%s497] sm:$0x1] %vm2553, %v2551
        %s2555 = sand.u32 %s284, 1
        %s2556 = scalar_lea.sflag [#allocation5], %s2555
        %s2557 = sand.u32 %s284, 1
        %s2558 = scalar_lea.vmem [#allocation14], %s2557
        // Predicated region
        $region89: #{tpu_custom_call.1} parent=63 // pred_check
          %p2559 = pneg %p294
        $region90: #{tpu_custom_call.1} parent=63 // pred_check_branch
          %2561 = sbr.rel (%p2559) target = $region92
        $region91: #{tpu_custom_call.1} parent=63 // pred_region
          %s2563 = ssub.s32 16, 16
          %2564 = vsyncadd %s2556, %s2563
          %s2565 = smul.addr %s35, 16
          %s2566 = scalar_lea.hbm %s11, %s2565
          %s2568 = sshll.u32 %s2558, 4
          %s2569 = int_to_ptr.vmem [resolvable:$true] %s2568
          %2571 = dma.vmem_to_hbm [thread:$0]  %s2569, 16, %s2566, %s2556
        $region92: #{tpu_custom_call.1} parent=63 // pred_fallthru
          _
      $region64: #{tpu_custom_call.1} parent=5 // pred_fallthru
        _
      %p2572 = scmp.le.s32.totalorder 2, %s30
      // Predicated region
      $region93: #{tpu_custom_call.1} parent=5 // pred_check
        %p2573 = pneg %p2572
      $region94: #{tpu_custom_call.1} parent=5 // pred_check_branch
        %2575 = sbr.rel (%p2573) target = $region96
      $region95: #{tpu_custom_call.1} parent=5 // pred_region
        %s2576 = ssub.s32 %s30, 2
        // Predicated region
        $region97: #{tpu_custom_call.1} parent=95 // pred_check
          %p2577 = pneg %p300
        $region98: #{tpu_custom_call.1} parent=95 // pred_check_branch
          %2579 = sbr.rel (%p2577) target = $region100
        $region99: #{tpu_custom_call.1} parent=95 // pred_region
          %s2580 = sand.u32 %s285, 1
          %s2581 = scalar_lea.sflag [#allocation5], %s2580
          %s2582 = sand.u32 %s285, 1
          %s2583 = scalar_lea.vmem [#allocation14], %s2582
          %2584 = dma.done %s2581, 16
        $region100: #{tpu_custom_call.1} parent=95 // pred_fallthru
          _
      $region96: #{tpu_custom_call.1} parent=5 // pred_fallthru
        _
    $region6: #{tpu_custom_call.1} parent=1 // loop_footer
      %s34 = sadd.s32 1, %s30
    $region7: #{tpu_custom_call.1} parent=1 // loop_footer_branch
      %29 = sbr.rel target = $region3
    $region8: #{tpu_custom_call.1} parent=1 // loop_exit
      _
    %2585 = vsyncpa [#allocation4], 1
    %s2586 = scalar_lea.sflag [#allocation4], 1
    %2587 = vsyncpa %s2586, 1
    %2588 = vsyncpa [#allocation7], 1
    %s2589 = scalar_lea.sflag [#allocation7], 1
    %2590 = vsyncpa %s2589, 1
    %2591 = vsyncpa [#allocation10], 1
    %2592 = vsyncpa [#allocation13], 1
    %2593 = vsyncpa [#allocation5], 1
    %s2594 = scalar_lea.sflag [#allocation5], 1
    %2595 = vsyncpa %s2594, 1

</llo_original>
